<compile_context>
chip_gen: v7x
topology: tpu7x:2x2x1
jax: 0.10.0
libtpu: 0.0.40
codegen_flags: <defaults>
</compile_context>

<pallas_src>
import functools
import math

import jax
import jax.numpy as jnp
from jax import lax
from jax.experimental import pallas as pl
from jax.experimental.pallas import tpu as pltpu

_MiB = 1024 * 1024
_MAX_BLOCK_B = 32   # bound on per-step unrolled examples (code size / compile time)


def _round_up(x, m):
    return ((x + m - 1) // m) * m


def _biattention_kernel(p_ref, h_ref, pm_row_ref, pm_col_ref, hm_row_ref,
                        hm_col_ref, att_p_ref, att_h_ref, *, block_b,
                        inv_sqrt_d, matmul_dtype, approx_recip):
    """Processes `block_b` (premise, hypothesis) pairs per grid step in VMEM.

    The per-example loop is fully unrolled (static trip count) so work from
    example i+1 hides the MXU drain / EUP latency of example i.
    """

    def body(i, carry):
        p = p_ref[i]              # (Lp_pad, D_pad)  input dtype (f32 or bf16)
        h = h_ref[i]              # (Lh_pad, D_pad)
        pm_r = pm_row_ref[i]      # (1, Lp_pad)      f32
        pm_c = pm_col_ref[i]      # (Lp_pad, 1)
        hm_r = hm_row_ref[i]      # (1, Lh_pad)
        hm_c = hm_col_ref[i]      # (Lh_pad, 1)

        p_mm = p.astype(matmul_dtype)   # no-op on the bf16-input path
        h_mm = h.astype(matmul_dtype)

        # Two NT matmuls on the MXU give both orientations of the similarity
        # matrix -- no XLU transpose of an (Lp, Lh) tile, both softmaxes stay
        # lane-axis reductions and both weighted sums are native NN matmuls.
        sim_ph = lax.dot_general(
            p_mm, h_mm, (((1,), (1,)), ((), ())),
            preferred_element_type=jnp.float32) * inv_sqrt_d      # (Lp, Lh)
        sim_hp = lax.dot_general(
            h_mm, p_mm, (((1,), (1,)), ((), ())),
            preferred_element_type=jnp.float32) * inv_sqrt_d      # (Lh, Lp)
        # TODO(synk): nn.Dropout(0) is identity; nonzero dropout would need
        # pltpu.prng_seed / pltpu.prng_random_bits.

        def esim_masked_softmax(logits, mask_row):
            # ESIM masked_softmax (softmax(logits*mask), re-mask, renormalize
            # with +1e-13), fused into a single lane reduction + reciprocal.
            z = logits * mask_row
            z = z - jnp.max(z, axis=-1, keepdims=True)            # stable
            n = jnp.exp(z) * mask_row
            denom = jnp.sum(n, axis=-1, keepdims=True) + 1e-13
            return n * pl.reciprocal(denom, approx=approx_recip)

        w_ph = esim_masked_softmax(sim_ph, hm_r)                  # (Lp, Lh)
        w_hp = esim_masked_softmax(sim_hp, pm_r)                  # (Lh, Lp)

        # Weighted sums (NN MXU matmuls) + query-side row masking.
        att_p = lax.dot_general(
            w_ph.astype(matmul_dtype), h_mm, (((1,), (0,)), ((), ())),
            preferred_element_type=jnp.float32) * pm_c            # (Lp, D)
        att_h = lax.dot_general(
            w_hp.astype(matmul_dtype), p_mm, (((1,), (0,)), ((), ())),
            preferred_element_type=jnp.float32) * hm_c            # (Lh, D)

        att_p_ref[i] = att_p.astype(att_p_ref.dtype)
        att_h_ref[i] = att_h.astype(att_h_ref.dtype)
        return carry

    lax.fori_loop(0, block_b, body, None, unroll=True)


def _vmem_capacity_bytes():
    try:
        return int(pltpu.get_tpu_info().vmem_capacity_bytes)
    except Exception:
        return 64 * _MiB   # conservative fallback == v7x per-TC VMEM


def _choose_block_b(batch, lp_pad, lh_pad, d_pad, in_itemsize, out_itemsize,
                    budget_bytes):
    # Double-buffered (x2) in+out example slabs plus lane/sublane-padded mask
    # streams per example.
    per_example = 2 * (
        (in_itemsize + out_itemsize) * (lp_pad + lh_pad) * d_pad
        + 4 * (lp_pad + lh_pad) * (128 + 8))
    bb = budget_bytes // max(per_example, 1)
    # Guarantee >= 2 grid steps when batch > 1 so dual-TC chips (v7x) split
    # the parallel batch axis across both TensorCores.
    bb = min(bb, max(1, (batch + 1) // 2))
    return int(max(1, min(batch, bb, _MAX_BLOCK_B)))


def bi_attention(premise_batch, premise_mask, hypothesis_batch, hypothesis_mask,
                 *, matmul_dtype=jnp.float32, block_b=None):
    """premise_batch: (B, Lp, D), premise_mask: (B, Lp),
       hypothesis_batch: (B, Lh, D), hypothesis_mask: (B, Lh)."""
    B, Lp, D = premise_batch.shape
    _, Lh, _ = hypothesis_batch.shape

    inv_sqrt_d = 1.0 / math.sqrt(D)   # scale uses the ORIGINAL feature dim

    use_bf16_inputs = matmul_dtype == jnp.bfloat16
    # bf16 path: ship bf16 operands (halves input DMA) and pad rows to 16 for
    # bf16 sublane packing; f32 path keeps f32 DMA and 8-row padding.
    in_dtype = jnp.bfloat16 if use_bf16_inputs else jnp.float32
    sublane = 16 if use_bf16_inputs else 8

    D_pad = _round_up(D, 128)          # lane-dense outputs / full MXU tiles
    Lp_pad = _round_up(Lp, sublane)
    Lh_pad = _round_up(Lh, sublane)
    out_dtype = premise_batch.dtype

    # Per-generation VMEM sizing: 128 MiB chips (v5e/v6e) -> 96 MiB limit /
    # ~24 MiB block data; 64 MiB-per-TC chips (v7x) -> 48 MiB / ~12 MiB.
    vmem_cap = _vmem_capacity_bytes()
    vmem_limit = max(32 * _MiB, min(96 * _MiB, vmem_cap - 16 * _MiB))
    block_budget = vmem_limit // 4

    if block_b is None:
        block_b = _choose_block_b(B, Lp_pad, Lh_pad, D_pad,
                                  jnp.dtype(in_dtype).itemsize,
                                  jnp.dtype(out_dtype).itemsize,
                                  block_budget)
    block_b = int(max(1, min(block_b, B)))

    B_pad = _round_up(B, block_b)
    steps = B_pad // block_b
    if steps > 1 and steps % 2 == 1:
        # Keep the parallel batch axis even so dual-TC chips split it evenly.
        B_pad += block_b
        steps += 1

    f32 = jnp.float32
    p = jnp.pad(premise_batch.astype(in_dtype),
                ((0, B_pad - B), (0, Lp_pad - Lp), (0, D_pad - D)))
    h = jnp.pad(hypothesis_batch.astype(in_dtype),
                ((0, B_pad - B), (0, Lh_pad - Lh), (0, D_pad - D)))
    pm = jnp.pad(premise_mask.astype(f32), ((0, B_pad - B), (0, Lp_pad - Lp)))
    hm = jnp.pad(hypothesis_mask.astype(f32), ((0, B_pad - B), (0, Lh_pad - Lh)))
    pm_row, pm_col = pm[:, None, :], pm[:, :, None]   # (B,1,Lp), (B,Lp,1)
    hm_row, hm_col = hm[:, None, :], hm[:, :, None]   # (B,1,Lh), (B,Lh,1)

    kernel = functools.partial(
        _biattention_kernel, block_b=block_b, inv_sqrt_d=inv_sqrt_d,
        matmul_dtype=matmul_dtype,
        # EUP vrcp only where the looser bf16 tolerance allows it; the f32
        # path keeps the exact reciprocal to stay within 1e-5 of the ref.
        approx_recip=use_bf16_inputs)

    grid_spec = pltpu.PrefetchScalarGridSpec(
        num_scalar_prefetch=0,
        grid=(steps,),
        in_specs=[
            pl.BlockSpec((block_b, Lp_pad, D_pad), lambda b: (b, 0, 0)),
            pl.BlockSpec((block_b, Lh_pad, D_pad), lambda b: (b, 0, 0)),
            pl.BlockSpec((block_b, 1, Lp_pad), lambda b: (b, 0, 0)),
            pl.BlockSpec((block_b, Lp_pad, 1), lambda b: (b, 0, 0)),
            pl.BlockSpec((block_b, 1, Lh_pad), lambda b: (b, 0, 0)),
            pl.BlockSpec((block_b, Lh_pad, 1), lambda b: (b, 0, 0)),
        ],
        out_specs=[
            pl.BlockSpec((block_b, Lp_pad, D_pad), lambda b: (b, 0, 0)),
            pl.BlockSpec((block_b, Lh_pad, D_pad), lambda b: (b, 0, 0)),
        ],
    )

    att_p_pad, att_h_pad = pl.pallas_call(
        kernel,
        out_shape=(
            jax.ShapeDtypeStruct((B_pad, Lp_pad, D_pad), out_dtype),
            jax.ShapeDtypeStruct((B_pad, Lh_pad, D_pad), out_dtype),
        ),
        grid_spec=grid_spec,
        compiler_params=pltpu.CompilerParams(
            dimension_semantics=("parallel",),
            vmem_limit_bytes=int(vmem_limit)),
    )(p, h, pm_row, pm_col, hm_row, hm_col)

    return att_p_pad[:B, :Lp, :D], att_h_pad[:B, :Lh, :D]


def _reference(premise_batch, premise_mask, hypothesis_batch, hypothesis_mask):
    """Pure-JAX reference mirroring the PyTorch/ESIM code."""
    d = hypothesis_batch.shape[-1]
    sim = jnp.einsum("bpd,bhd->bph", premise_batch, hypothesis_batch) / math.sqrt(d)

    def masked_softmax(t, mask):
        m = mask.astype(jnp.float32)[:, None, :]
        x = t * m
        x = x - jnp.max(x, axis=-1, keepdims=True)
        e = jnp.exp(x)
        r = e / jnp.sum(e, axis=-1, keepdims=True)
        r = r * m
        return r / (jnp.sum(r, axis=-1, keepdims=True) + 1e-13)

    def weighted_sum(tensor, weights, mask):
        ws = jnp.einsum("bmn,bnd->bmd", weights, tensor)
        return ws * mask.astype(jnp.float32)[:, :, None]

    prem_hyp_attn = masked_softmax(sim, hypothesis_mask)
    hyp_prem_attn = masked_softmax(jnp.swapaxes(sim, 1, 2), premise_mask)
    attended_premises = weighted_sum(hypothesis_batch, prem_hyp_attn, premise_mask)
    attended_hypotheses = weighted_sum(premise_batch, hyp_prem_attn, hypothesis_mask)
    return attended_premises, attended_hypotheses


if __name__ == "__main__":
    key = jax.random.PRNGKey(0)
    B, Lp, Lh, D = 3, 13, 9, 32

    kp, kh = jax.random.split(key)
    premise = jax.random.normal(kp, (B, Lp, D), dtype=jnp.float32)
    hypothesis = jax.random.normal(kh, (B, Lh, D), dtype=jnp.float32)

    # Deterministic padding masks (1 = valid, 0 = pad), varying per batch row.
    prem_lens = jnp.array([Lp, 8, 5])
    hyp_lens = jnp.array([6, Lh, 4])
    premise_mask = (jnp.arange(Lp)[None, :] < prem_lens[:, None]).astype(jnp.float32)
    hypothesis_mask = (jnp.arange(Lh)[None, :] < hyp_lens[:, None]).astype(jnp.float32)

    # Auto block_b: with B=3 the >=2-step guarantee picks block_b=2 -> 2 grid
    # steps, exercising batch blocking + batch padding + the unrolled loop.
    att_p, att_h = bi_attention(premise, premise_mask, hypothesis, hypothesis_mask)
    jax.block_until_ready((att_p, att_h))

    ref_p, ref_h = _reference(premise, premise_mask, hypothesis, hypothesis_mask)
    assert att_p.shape == ref_p.shape and att_h.shape == ref_h.shape
    assert jnp.allclose(att_p, ref_p, atol=1e-5, rtol=1e-5)
    assert jnp.allclose(att_h, ref_h, atol=1e-5, rtol=1e-5)

    # bf16 fast path: bf16 input DMA, 16-row padding, EUP approx reciprocal;
    # looser tolerance vs the f32 reference.
    att_p_bf, att_h_bf = bi_attention(premise, premise_mask, hypothesis,
                                      hypothesis_mask, matmul_dtype=jnp.bfloat16)
    jax.block_until_ready((att_p_bf, att_h_bf))
    assert jnp.allclose(att_p_bf, ref_p, atol=2.5e-1, rtol=5e-2)
    assert jnp.allclose(att_h_bf, ref_h, atol=2.5e-1, rtol=5e-2)

    print("KERNEL_OK")
</pallas_src>

<mosaic_0001>
module attributes {stable_mosaic.version = 11 : i64} {
  func.func @_biattention_kernel(%arg0: i32, %arg1: memref<2x16x128xf32, #tpu.memory_space<vmem>>, %arg2: memref<2x16x128xf32, #tpu.memory_space<vmem>>, %arg3: memref<2x1x16xf32, #tpu.memory_space<vmem>>, %arg4: memref<2x16x1xf32, #tpu.memory_space<vmem>>, %arg5: memref<2x1x16xf32, #tpu.memory_space<vmem>>, %arg6: memref<2x16x1xf32, #tpu.memory_space<vmem>>, %arg7: memref<2x16x128xf32, #tpu.memory_space<vmem>>, %arg8: memref<2x16x128xf32, #tpu.memory_space<vmem>>) attributes {dimension_semantics = [#tpu.dimension_semantics<parallel>], iteration_bounds = array<i64: 2>, scalar_prefetch = 0 : i64, scratch_operands = 0 : i64, tpu.core_type = #tpu.core_type<tc>, window_params = [{transform_indices = @transform_0, window_bounds = array<i64: 2, 16, 128>}, {transform_indices = @transform_1, window_bounds = array<i64: 2, 16, 128>}, {transform_indices = @transform_2, window_bounds = array<i64: 2, 1, 16>}, {transform_indices = @transform_3, window_bounds = array<i64: 2, 16, 1>}, {transform_indices = @transform_4, window_bounds = array<i64: 2, 1, 16>}, {transform_indices = @transform_5, window_bounds = array<i64: 2, 16, 1>}, {transform_indices = @transform_6, window_bounds = array<i64: 2, 16, 128>}, {transform_indices = @transform_7, window_bounds = array<i64: 2, 16, 128>}]} {
    %c0_i32 = arith.constant 0 : i32
    %0 = arith.index_cast %c0_i32 : i32 to index
    %c0 = arith.constant 0 : index
    %c0_0 = arith.constant 0 : index
    %1 = vector.load %arg1[%0, %c0, %c0_0] : memref<2x16x128xf32, #tpu.memory_space<vmem>>, vector<1x16x128xf32>
    %2 = vector.shape_cast %1 : vector<1x16x128xf32> to vector<16x128xf32>
    %3 = arith.index_cast %c0_i32 : i32 to index
    %c0_1 = arith.constant 0 : index
    %c0_2 = arith.constant 0 : index
    %4 = vector.load %arg2[%3, %c0_1, %c0_2] : memref<2x16x128xf32, #tpu.memory_space<vmem>>, vector<1x16x128xf32>
    %5 = vector.shape_cast %4 : vector<1x16x128xf32> to vector<16x128xf32>
    %6 = arith.index_cast %c0_i32 : i32 to index
    %c0_3 = arith.constant 0 : index
    %c0_4 = arith.constant 0 : index
    %7 = vector.load %arg3[%6, %c0_3, %c0_4] : memref<2x1x16xf32, #tpu.memory_space<vmem>>, vector<1x1x16xf32>
    %8 = vector.shape_cast %7 : vector<1x1x16xf32> to vector<1x16xf32>
    %9 = arith.index_cast %c0_i32 : i32 to index
    %c0_5 = arith.constant 0 : index
    %c0_6 = arith.constant 0 : index
    %10 = vector.load %arg4[%9, %c0_5, %c0_6] : memref<2x16x1xf32, #tpu.memory_space<vmem>>, vector<1x16x1xf32>
    %11 = vector.shape_cast %10 : vector<1x16x1xf32> to vector<16x1xf32>
    %12 = arith.index_cast %c0_i32 : i32 to index
    %c0_7 = arith.constant 0 : index
    %c0_8 = arith.constant 0 : index
    %13 = vector.load %arg5[%12, %c0_7, %c0_8] : memref<2x1x16xf32, #tpu.memory_space<vmem>>, vector<1x1x16xf32>
    %14 = vector.shape_cast %13 : vector<1x1x16xf32> to vector<1x16xf32>
    %15 = arith.index_cast %c0_i32 : i32 to index
    %c0_9 = arith.constant 0 : index
    %c0_10 = arith.constant 0 : index
    %16 = vector.load %arg6[%15, %c0_9, %c0_10] : memref<2x16x1xf32, #tpu.memory_space<vmem>>, vector<1x16x1xf32>
    %17 = vector.shape_cast %16 : vector<1x16x1xf32> to vector<16x1xf32>
    %cst = arith.constant dense<0.000000e+00> : vector<16x16xf32>
    %18 = tpu.matmul %2, %5, %cst {dimension_numbers = #tpu.dot_dimension_numbers<[1], [1], [0], [0], [0, 0, 1, 0], [], []>} : vector<16x128xf32>, vector<16x128xf32>, vector<16x16xf32> -> vector<16x16xf32>
    %cst_11 = arith.constant 0.176776692 : f32
    %19 = vector.broadcast %cst_11 : f32 to vector<16x16xf32>
    %20 = arith.mulf %18, %19 : vector<16x16xf32>
    %cst_12 = arith.constant dense<0.000000e+00> : vector<16x16xf32>
    %21 = tpu.matmul %5, %2, %cst_12 {dimension_numbers = #tpu.dot_dimension_numbers<[1], [1], [0], [0], [0, 0, 1, 0], [], []>} : vector<16x128xf32>, vector<16x128xf32>, vector<16x16xf32> -> vector<16x16xf32>
    %cst_13 = arith.constant 0.176776692 : f32
    %22 = vector.broadcast %cst_13 : f32 to vector<16x16xf32>
    %23 = arith.mulf %21, %22 : vector<16x16xf32>
    %24 = vector.broadcast %14 : vector<1x16xf32> to vector<16x16xf32>
    %25 = arith.mulf %20, %24 : vector<16x16xf32>
    %cst_14 = arith.constant dense<0xFF800000> : vector<16xf32>
    %26 = vector.multi_reduction <maximumf>, %25, %cst_14 [1] : vector<16x16xf32> to vector<16xf32>
    %27 = vector.shape_cast %26 : vector<16xf32> to vector<16x1xf32>
    %28 = vector.broadcast %27 : vector<16x1xf32> to vector<16x16xf32>
    %29 = arith.subf %25, %28 : vector<16x16xf32>
    %30 = math.exp %29 : vector<16x16xf32>
    %31 = vector.broadcast %14 : vector<1x16xf32> to vector<16x16xf32>
    %32 = arith.mulf %30, %31 : vector<16x16xf32>
    %cst_15 = arith.constant dense<0.000000e+00> : vector<16xf32>
    %33 = vector.multi_reduction <add>, %32, %cst_15 [1] : vector<16x16xf32> to vector<16xf32>
    %34 = vector.shape_cast %33 : vector<16xf32> to vector<16x1xf32>
    %cst_16 = arith.constant 9.99999982E-14 : f32
    %35 = vector.broadcast %cst_16 : f32 to vector<16x1xf32>
    %36 = arith.addf %34, %35 : vector<16x1xf32>
    %37 = tpu.reciprocal %36 : vector<16x1xf32> -> vector<16x1xf32>
    %38 = vector.broadcast %37 : vector<16x1xf32> to vector<16x16xf32>
    %39 = arith.mulf %32, %38 : vector<16x16xf32>
    %40 = vector.broadcast %8 : vector<1x16xf32> to vector<16x16xf32>
    %41 = arith.mulf %23, %40 : vector<16x16xf32>
    %cst_17 = arith.constant dense<0xFF800000> : vector<16xf32>
    %42 = vector.multi_reduction <maximumf>, %41, %cst_17 [1] : vector<16x16xf32> to vector<16xf32>
    %43 = vector.shape_cast %42 : vector<16xf32> to vector<16x1xf32>
    %44 = vector.broadcast %43 : vector<16x1xf32> to vector<16x16xf32>
    %45 = arith.subf %41, %44 : vector<16x16xf32>
    %46 = math.exp %45 : vector<16x16xf32>
    %47 = vector.broadcast %8 : vector<1x16xf32> to vector<16x16xf32>
    %48 = arith.mulf %46, %47 : vector<16x16xf32>
    %cst_18 = arith.constant dense<0.000000e+00> : vector<16xf32>
    %49 = vector.multi_reduction <add>, %48, %cst_18 [1] : vector<16x16xf32> to vector<16xf32>
    %50 = vector.shape_cast %49 : vector<16xf32> to vector<16x1xf32>
    %cst_19 = arith.constant 9.99999982E-14 : f32
    %51 = vector.broadcast %cst_19 : f32 to vector<16x1xf32>
    %52 = arith.addf %50, %51 : vector<16x1xf32>
    %53 = tpu.reciprocal %52 : vector<16x1xf32> -> vector<16x1xf32>
    %54 = vector.broadcast %53 : vector<16x1xf32> to vector<16x16xf32>
    %55 = arith.mulf %48, %54 : vector<16x16xf32>
    %cst_20 = arith.constant dense<0.000000e+00> : vector<16x128xf32>
    %56 = tpu.matmul %39, %5, %cst_20 {dimension_numbers = #tpu.dot_dimension_numbers<[1], [0], [0], [1], [0, 0, 1, 1], [], []>} : vector<16x16xf32>, vector<16x128xf32>, vector<16x128xf32> -> vector<16x128xf32>
    %57 = vector.broadcast %11 : vector<16x1xf32> to vector<16x128xf32>
    %58 = arith.mulf %56, %57 : vector<16x128xf32>
    %cst_21 = arith.constant dense<0.000000e+00> : vector<16x128xf32>
    %59 = tpu.matmul %55, %2, %cst_21 {dimension_numbers = #tpu.dot_dimension_numbers<[1], [0], [0], [1], [0, 0, 1, 1], [], []>} : vector<16x16xf32>, vector<16x128xf32>, vector<16x128xf32> -> vector<16x128xf32>
    %60 = vector.broadcast %17 : vector<16x1xf32> to vector<16x128xf32>
    %61 = arith.mulf %59, %60 : vector<16x128xf32>
    %62 = arith.index_cast %c0_i32 : i32 to index
    %c0_22 = arith.constant 0 : index
    %c0_23 = arith.constant 0 : index
    %63 = vector.load %arg7[%62, %c0_22, %c0_23] : memref<2x16x128xf32, #tpu.memory_space<vmem>>, vector<1x16x128xf32>
    %64 = vector.shape_cast %63 : vector<1x16x128xf32> to vector<16x128xf32>
    %65 = vector.shape_cast %58 : vector<16x128xf32> to vector<1x16x128xf32>
    tpu.vector_store %arg7[%62, %c0_22, %c0_23], %65 {strides = array<i32>} : memref<2x16x128xf32, #tpu.memory_space<vmem>>, vector<1x16x128xf32>,
    %66 = arith.index_cast %c0_i32 : i32 to index
    %c0_24 = arith.constant 0 : index
    %c0_25 = arith.constant 0 : index
    %67 = vector.load %arg8[%66, %c0_24, %c0_25] : memref<2x16x128xf32, #tpu.memory_space<vmem>>, vector<1x16x128xf32>
    %68 = vector.shape_cast %67 : vector<1x16x128xf32> to vector<16x128xf32>
    %69 = vector.shape_cast %61 : vector<16x128xf32> to vector<1x16x128xf32>
    tpu.vector_store %arg8[%66, %c0_24, %c0_25], %69 {strides = array<i32>} : memref<2x16x128xf32, #tpu.memory_space<vmem>>, vector<1x16x128xf32>,
    %c1_i32 = arith.constant 1 : i32
    %70 = arith.index_cast %c1_i32 : i32 to index
    %c0_26 = arith.constant 0 : index
    %c0_27 = arith.constant 0 : index
    %71 = vector.load %arg1[%70, %c0_26, %c0_27] : memref<2x16x128xf32, #tpu.memory_space<vmem>>, vector<1x16x128xf32>
    %72 = vector.shape_cast %71 : vector<1x16x128xf32> to vector<16x128xf32>
    %73 = arith.index_cast %c1_i32 : i32 to index
    %c0_28 = arith.constant 0 : index
    %c0_29 = arith.constant 0 : index
    %74 = vector.load %arg2[%73, %c0_28, %c0_29] : memref<2x16x128xf32, #tpu.memory_space<vmem>>, vector<1x16x128xf32>
    %75 = vector.shape_cast %74 : vector<1x16x128xf32> to vector<16x128xf32>
    %76 = arith.index_cast %c1_i32 : i32 to index
    %c0_30 = arith.constant 0 : index
    %c0_31 = arith.constant 0 : index
    %77 = vector.load %arg3[%76, %c0_30, %c0_31] : memref<2x1x16xf32, #tpu.memory_space<vmem>>, vector<1x1x16xf32>
    %78 = vector.shape_cast %77 : vector<1x1x16xf32> to vector<1x16xf32>
    %79 = arith.index_cast %c1_i32 : i32 to index
    %c0_32 = arith.constant 0 : index
    %c0_33 = arith.constant 0 : index
    %80 = vector.load %arg4[%79, %c0_32, %c0_33] : memref<2x16x1xf32, #tpu.memory_space<vmem>>, vector<1x16x1xf32>
    %81 = vector.shape_cast %80 : vector<1x16x1xf32> to vector<16x1xf32>
    %82 = arith.index_cast %c1_i32 : i32 to index
    %c0_34 = arith.constant 0 : index
    %c0_35 = arith.constant 0 : index
    %83 = vector.load %arg5[%82, %c0_34, %c0_35] : memref<2x1x16xf32, #tpu.memory_space<vmem>>, vector<1x1x16xf32>
    %84 = vector.shape_cast %83 : vector<1x1x16xf32> to vector<1x16xf32>
    %85 = arith.index_cast %c1_i32 : i32 to index
    %c0_36 = arith.constant 0 : index
    %c0_37 = arith.constant 0 : index
    %86 = vector.load %arg6[%85, %c0_36, %c0_37] : memref<2x16x1xf32, #tpu.memory_space<vmem>>, vector<1x16x1xf32>
    %87 = vector.shape_cast %86 : vector<1x16x1xf32> to vector<16x1xf32>
    %cst_38 = arith.constant dense<0.000000e+00> : vector<16x16xf32>
    %88 = tpu.matmul %72, %75, %cst_38 {dimension_numbers = #tpu.dot_dimension_numbers<[1], [1], [0], [0], [0, 0, 1, 0], [], []>} : vector<16x128xf32>, vector<16x128xf32>, vector<16x16xf32> -> vector<16x16xf32>
    %cst_39 = arith.constant 0.176776692 : f32
    %89 = vector.broadcast %cst_39 : f32 to vector<16x16xf32>
    %90 = arith.mulf %88, %89 : vector<16x16xf32>
    %cst_40 = arith.constant dense<0.000000e+00> : vector<16x16xf32>
    %91 = tpu.matmul %75, %72, %cst_40 {dimension_numbers = #tpu.dot_dimension_numbers<[1], [1], [0], [0], [0, 0, 1, 0], [], []>} : vector<16x128xf32>, vector<16x128xf32>, vector<16x16xf32> -> vector<16x16xf32>
    %cst_41 = arith.constant 0.176776692 : f32
    %92 = vector.broadcast %cst_41 : f32 to vector<16x16xf32>
    %93 = arith.mulf %91, %92 : vector<16x16xf32>
    %94 = vector.broadcast %84 : vector<1x16xf32> to vector<16x16xf32>
    %95 = arith.mulf %90, %94 : vector<16x16xf32>
    %cst_42 = arith.constant dense<0xFF800000> : vector<16xf32>
    %96 = vector.multi_reduction <maximumf>, %95, %cst_42 [1] : vector<16x16xf32> to vector<16xf32>
    %97 = vector.shape_cast %96 : vector<16xf32> to vector<16x1xf32>
    %98 = vector.broadcast %97 : vector<16x1xf32> to vector<16x16xf32>
    %99 = arith.subf %95, %98 : vector<16x16xf32>
    %100 = math.exp %99 : vector<16x16xf32>
    %101 = vector.broadcast %84 : vector<1x16xf32> to vector<16x16xf32>
    %102 = arith.mulf %100, %101 : vector<16x16xf32>
    %cst_43 = arith.constant dense<0.000000e+00> : vector<16xf32>
    %103 = vector.multi_reduction <add>, %102, %cst_43 [1] : vector<16x16xf32> to vector<16xf32>
    %104 = vector.shape_cast %103 : vector<16xf32> to vector<16x1xf32>
    %cst_44 = arith.constant 9.99999982E-14 : f32
    %105 = vector.broadcast %cst_44 : f32 to vector<16x1xf32>
    %106 = arith.addf %104, %105 : vector<16x1xf32>
    %107 = tpu.reciprocal %106 : vector<16x1xf32> -> vector<16x1xf32>
    %108 = vector.broadcast %107 : vector<16x1xf32> to vector<16x16xf32>
    %109 = arith.mulf %102, %108 : vector<16x16xf32>
    %110 = vector.broadcast %78 : vector<1x16xf32> to vector<16x16xf32>
    %111 = arith.mulf %93, %110 : vector<16x16xf32>
    %cst_45 = arith.constant dense<0xFF800000> : vector<16xf32>
    %112 = vector.multi_reduction <maximumf>, %111, %cst_45 [1] : vector<16x16xf32> to vector<16xf32>
    %113 = vector.shape_cast %112 : vector<16xf32> to vector<16x1xf32>
    %114 = vector.broadcast %113 : vector<16x1xf32> to vector<16x16xf32>
    %115 = arith.subf %111, %114 : vector<16x16xf32>
    %116 = math.exp %115 : vector<16x16xf32>
    %117 = vector.broadcast %78 : vector<1x16xf32> to vector<16x16xf32>
    %118 = arith.mulf %116, %117 : vector<16x16xf32>
    %cst_46 = arith.constant dense<0.000000e+00> : vector<16xf32>
    %119 = vector.multi_reduction <add>, %118, %cst_46 [1] : vector<16x16xf32> to vector<16xf32>
    %120 = vector.shape_cast %119 : vector<16xf32> to vector<16x1xf32>
    %cst_47 = arith.constant 9.99999982E-14 : f32
    %121 = vector.broadcast %cst_47 : f32 to vector<16x1xf32>
    %122 = arith.addf %120, %121 : vector<16x1xf32>
    %123 = tpu.reciprocal %122 : vector<16x1xf32> -> vector<16x1xf32>
    %124 = vector.broadcast %123 : vector<16x1xf32> to vector<16x16xf32>
    %125 = arith.mulf %118, %124 : vector<16x16xf32>
    %cst_48 = arith.constant dense<0.000000e+00> : vector<16x128xf32>
    %126 = tpu.matmul %109, %75, %cst_48 {dimension_numbers = #tpu.dot_dimension_numbers<[1], [0], [0], [1], [0, 0, 1, 1], [], []>} : vector<16x16xf32>, vector<16x128xf32>, vector<16x128xf32> -> vector<16x128xf32>
    %127 = vector.broadcast %81 : vector<16x1xf32> to vector<16x128xf32>
    %128 = arith.mulf %126, %127 : vector<16x128xf32>
    %cst_49 = arith.constant dense<0.000000e+00> : vector<16x128xf32>
    %129 = tpu.matmul %125, %72, %cst_49 {dimension_numbers = #tpu.dot_dimension_numbers<[1], [0], [0], [1], [0, 0, 1, 1], [], []>} : vector<16x16xf32>, vector<16x128xf32>, vector<16x128xf32> -> vector<16x128xf32>
    %130 = vector.broadcast %87 : vector<16x1xf32> to vector<16x128xf32>
    %131 = arith.mulf %129, %130 : vector<16x128xf32>
    %132 = arith.index_cast %c1_i32 : i32 to index
    %c0_50 = arith.constant 0 : index
    %c0_51 = arith.constant 0 : index
    %133 = vector.load %arg7[%132, %c0_50, %c0_51] : memref<2x16x128xf32, #tpu.memory_space<vmem>>, vector<1x16x128xf32>
    %134 = vector.shape_cast %133 : vector<1x16x128xf32> to vector<16x128xf32>
    %135 = vector.shape_cast %128 : vector<16x128xf32> to vector<1x16x128xf32>
    tpu.vector_store %arg7[%132, %c0_50, %c0_51], %135 {strides = array<i32>} : memref<2x16x128xf32, #tpu.memory_space<vmem>>, vector<1x16x128xf32>,
    %136 = arith.index_cast %c1_i32 : i32 to index
    %c0_52 = arith.constant 0 : index
    %c0_53 = arith.constant 0 : index
    %137 = vector.load %arg8[%136, %c0_52, %c0_53] : memref<2x16x128xf32, #tpu.memory_space<vmem>>, vector<1x16x128xf32>
    %138 = vector.shape_cast %137 : vector<1x16x128xf32> to vector<16x128xf32>
    %139 = vector.shape_cast %131 : vector<16x128xf32> to vector<1x16x128xf32>
    tpu.vector_store %arg8[%136, %c0_52, %c0_53], %139 {strides = array<i32>} : memref<2x16x128xf32, #tpu.memory_space<vmem>>, vector<1x16x128xf32>,
    %c2_i32 = arith.constant 2 : i32
    return
  }
  func.func @transform_0(%arg0: i32) -> (i32, i32, i32) {
    %c0_i32 = arith.constant 0 : i32
    %c0_i32_0 = arith.constant 0 : i32
    %c0_i32_1 = arith.constant 0 : i32
    return %arg0, %c0_i32, %c0_i32_0 : i32, i32, i32
  }
  func.func @transform_1(%arg0: i32) -> (i32, i32, i32) {
    %c0_i32 = arith.constant 0 : i32
    %c0_i32_0 = arith.constant 0 : i32
    %c0_i32_1 = arith.constant 0 : i32
    return %arg0, %c0_i32, %c0_i32_0 : i32, i32, i32
  }
  func.func @transform_2(%arg0: i32) -> (i32, i32, i32) {
    %c0_i32 = arith.constant 0 : i32
    %c0_i32_0 = arith.constant 0 : i32
    %c0_i32_1 = arith.constant 0 : i32
    return %arg0, %c0_i32, %c0_i32_0 : i32, i32, i32
  }
  func.func @transform_3(%arg0: i32) -> (i32, i32, i32) {
    %c0_i32 = arith.constant 0 : i32
    %c0_i32_0 = arith.constant 0 : i32
    %c0_i32_1 = arith.constant 0 : i32
    return %arg0, %c0_i32, %c0_i32_0 : i32, i32, i32
  }
  func.func @transform_4(%arg0: i32) -> (i32, i32, i32) {
    %c0_i32 = arith.constant 0 : i32
    %c0_i32_0 = arith.constant 0 : i32
    %c0_i32_1 = arith.constant 0 : i32
    return %arg0, %c0_i32, %c0_i32_0 : i32, i32, i32
  }
  func.func @transform_5(%arg0: i32) -> (i32, i32, i32) {
    %c0_i32 = arith.constant 0 : i32
    %c0_i32_0 = arith.constant 0 : i32
    %c0_i32_1 = arith.constant 0 : i32
    return %arg0, %c0_i32, %c0_i32_0 : i32, i32, i32
  }
  func.func @transform_6(%arg0: i32) -> (i32, i32, i32) {
    %c0_i32 = arith.constant 0 : i32
    %c0_i32_0 = arith.constant 0 : i32
    %c0_i32_1 = arith.constant 0 : i32
    return %arg0, %c0_i32, %c0_i32_0 : i32, i32, i32
  }
  func.func @transform_7(%arg0: i32) -> (i32, i32, i32) {
    %c0_i32 = arith.constant 0 : i32
    %c0_i32_0 = arith.constant 0 : i32
    %c0_i32_1 = arith.constant 0 : i32
    return %arg0, %c0_i32, %c0_i32_0 : i32, i32, i32
  }
}

</mosaic_0001>

<llo_original>
// kernel: tpu_custom_call.1
$region0: #{tpu_custom_call.1}
  #allocation0 [shape = 'u32[]', space=smem, size = 0x4, offset = 0x4, fixed_abs, tag = 'smem constant byte address 0x4 - core index']
  #allocation1 [shape = 'u32[144,128]{1,0:T(1,128)}', space=vmem, size = 0x12000, scoped, tag = 'internal scratch']
  %s0 = inlined_call_operand.vmem [shape: f32[4,16,128], index: 0, kind: input, shape index: {}]
  %s1 = inlined_call_operand.vmem [shape: f32[4,16,128], index: 1, kind: input, shape index: {}]
  %s2 = inlined_call_operand.vmem [shape: f32[4,1,16], index: 2, kind: input, shape index: {}]
  %s3 = inlined_call_operand.vmem [shape: f32[4,16,1], index: 3, kind: input, shape index: {}]
  %s4 = inlined_call_operand.vmem [shape: f32[4,1,16], index: 4, kind: input, shape index: {}]
  %s5 = inlined_call_operand.vmem [shape: f32[4,16,1], index: 5, kind: input, shape index: {}]
  %s6 = inlined_call_operand.hbm [shape: f32[4,16,128], index: 6, kind: output, shape index: {0}]
  %s7 = inlined_call_operand.hbm [shape: f32[4,16,128], index: 7, kind: output, shape index: {1}]
  %8 = xla_tuple %s6, %s7
  %s9 = sld [smem:[#allocation0]]
  $region65: #{tpu_custom_call.1} parent=0
    _
  %s11 = ssub.s32 1, %s9
  %s12 = scalar_select 0, %s11, %s9
  $region1: #{tpu_custom_call.1} parent=0
    #allocation2 [shape = 'u8[32768]{0}', space=vmem, size = 0x8000, scoped, tag = 'output window, operand 0']
    #allocation3 [shape = 's32[2]{0}', space=sflag, size = 0x8, scoped, tag = 'scoped memory for tpu_custom_call.1']
    #allocation4 [shape = 'u8[32768]{0}', space=vmem, size = 0x8000, scoped, tag = 'output window, operand 1']
    #allocation5 [shape = 's32[2]{0}', space=sflag, size = 0x8, scoped, tag = 'scoped memory for tpu_custom_call.1']
    %13 = vsyncpa [#allocation3], 0
    %s14 = scalar_lea.sflag [#allocation3], 1
    %15 = vsyncpa %s14, 0
    %16 = vsyncpa [#allocation5], 0
    %s17 = scalar_lea.sflag [#allocation5], 1
    %18 = vsyncpa %s17, 0
    loop: start=0, step=1, limit=4
    $region2: #{tpu_custom_call.1} parent=1 // loop_pre_header
      _
    $region3: #{tpu_custom_call.1} parent=1 // loop_header
      %s20 = sphi 0, %s24
      %p21 = scmp.ge.s32.totalorder %s20, 4
      %s30 = sphi 0, %s32
      %s33 = sphi 0, %s30
      %s34 = sphi 0, %s33
      %s50 = sphi 0, %s34
      %s56 = sphi 0, %s58
      %s59 = sphi 0, %s56
      %s60 = sphi 0, %s59
      %s76 = sphi 0, %s60
      %s82 = sphi 0, %s84
      %s85 = sphi 0, %s82
      %s86 = sphi 0, %s85
      %s102 = sphi 0, %s86
      %s108 = sphi 0, %s110
      %s111 = sphi 0, %s108
      %s112 = sphi 0, %s111
      %s128 = sphi 0, %s112
      %s134 = sphi 0, %s136
      %s137 = sphi 0, %s134
      %s138 = sphi 0, %s137
      %s154 = sphi 0, %s138
      %s160 = sphi 0, %s162
      %s163 = sphi 0, %s160
      %s164 = sphi 0, %s163
      %s180 = sphi 0, %s164
      %s186 = sphi 0, %s188
      %s189 = sphi 0, %s186
      %s190 = sphi 0, %s189
      %s206 = sphi 0, %s190
      %s212 = sphi 0, %s214
      %s215 = sphi 0, %s212
      %s216 = sphi 0, %s215
      %s232 = sphi 0, %s216
    $region4: #{tpu_custom_call.1} parent=1 // loop_header_branch
      %23 = sbr.rel (%p21) target = $region8
    $region5: #{tpu_custom_call.1} parent=1 // loop_body
      %s25 = ssub.s32 %s20, 1
      %s26 = ssub.s32 %s20, 2
      %s27 = sadd.s32 %s20, 1
      %s28 = ssub.s32 %s20, %s27
      %p29 = scmp.eq.s32.totalorder %s28, 0
      %s31 = sadd.s32 %s30, 1
      %s32 = scalar_select %p29, %s30, %s31
      %p35 = pneg %p29
      %p36 = scmp.eq.s32.totalorder %s20, 1
      %p37 = por %p35, %p36
      %p38 = scmp.ne.s32.totalorder %s30, %s33
      %p39 = scmp.eq.s32.totalorder %s20, 0
      %p40 = por %p38, %p39
      %p41 = scmp.ne.s32.totalorder %s30, %s33
      %p42 = scmp.eq.s32.totalorder %s25, 1
      %p43 = por %p41, %p42
      %p44 = scmp.ne.s32.totalorder %s33, %s34
      %p45 = scmp.eq.s32.totalorder %s25, 0
      %p46 = por %p44, %p45
      %p47 = scmp.ne.s32.totalorder %s33, %s34
      %p48 = scmp.eq.s32.totalorder %s26, 1
      %p49 = por %p47, %p48
      %p51 = scmp.ne.s32.totalorder %s34, %s50
      %p52 = scmp.eq.s32.totalorder %s26, 0
      %p53 = por %p51, %p52
      %s54 = ssub.s32 %s20, %s27
      %p55 = scmp.eq.s32.totalorder %s54, 0
      %s57 = sadd.s32 %s56, 1
      %s58 = scalar_select %p55, %s56, %s57
      %p61 = pneg %p55
      %p62 = scmp.eq.s32.totalorder %s20, 1
      %p63 = por %p61, %p62
      %p64 = scmp.ne.s32.totalorder %s56, %s59
      %p65 = scmp.eq.s32.totalorder %s20, 0
      %p66 = por %p64, %p65
      %p67 = scmp.ne.s32.totalorder %s56, %s59
      %p68 = scmp.eq.s32.totalorder %s25, 1
      %p69 = por %p67, %p68
      %p70 = scmp.ne.s32.totalorder %s59, %s60
      %p71 = scmp.eq.s32.totalorder %s25, 0
      %p72 = por %p70, %p71
      %p73 = scmp.ne.s32.totalorder %s59, %s60
      %p74 = scmp.eq.s32.totalorder %s26, 1
      %p75 = por %p73, %p74
      %p77 = scmp.ne.s32.totalorder %s60, %s76
      %p78 = scmp.eq.s32.totalorder %s26, 0
      %p79 = por %p77, %p78
      %s80 = ssub.s32 %s20, %s27
      %p81 = scmp.eq.s32.totalorder %s80, 0
      %s83 = sadd.s32 %s82, 1
      %s84 = scalar_select %p81, %s82, %s83
      %p87 = pneg %p81
      %p88 = scmp.eq.s32.totalorder %s20, 1
      %p89 = por %p87, %p88
      %p90 = scmp.ne.s32.totalorder %s82, %s85
      %p91 = scmp.eq.s32.totalorder %s20, 0
      %p92 = por %p90, %p91
      %p93 = scmp.ne.s32.totalorder %s82, %s85
      %p94 = scmp.eq.s32.totalorder %s25, 1
      %p95 = por %p93, %p94
      %p96 = scmp.ne.s32.totalorder %s85, %s86
      %p97 = scmp.eq.s32.totalorder %s25, 0
      %p98 = por %p96, %p97
      %p99 = scmp.ne.s32.totalorder %s85, %s86
      %p100 = scmp.eq.s32.totalorder %s26, 1
      %p101 = por %p99, %p100
      %p103 = scmp.ne.s32.totalorder %s86, %s102
      %p104 = scmp.eq.s32.totalorder %s26, 0
      %p105 = por %p103, %p104
      %s106 = ssub.s32 %s20, %s27
      %p107 = scmp.eq.s32.totalorder %s106, 0
      %s109 = sadd.s32 %s108, 1
      %s110 = scalar_select %p107, %s108, %s109
      %p113 = pneg %p107
      %p114 = scmp.eq.s32.totalorder %s20, 1
      %p115 = por %p113, %p114
      %p116 = scmp.ne.s32.totalorder %s108, %s111
      %p117 = scmp.eq.s32.totalorder %s20, 0
      %p118 = por %p116, %p117
      %p119 = scmp.ne.s32.totalorder %s108, %s111
      %p120 = scmp.eq.s32.totalorder %s25, 1
      %p121 = por %p119, %p120
      %p122 = scmp.ne.s32.totalorder %s111, %s112
      %p123 = scmp.eq.s32.totalorder %s25, 0
      %p124 = por %p122, %p123
      %p125 = scmp.ne.s32.totalorder %s111, %s112
      %p126 = scmp.eq.s32.totalorder %s26, 1
      %p127 = por %p125, %p126
      %p129 = scmp.ne.s32.totalorder %s112, %s128
      %p130 = scmp.eq.s32.totalorder %s26, 0
      %p131 = por %p129, %p130
      %s132 = ssub.s32 %s20, %s27
      %p133 = scmp.eq.s32.totalorder %s132, 0
      %s135 = sadd.s32 %s134, 1
      %s136 = scalar_select %p133, %s134, %s135
      %p139 = pneg %p133
      %p140 = scmp.eq.s32.totalorder %s20, 1
      %p141 = por %p139, %p140
      %p142 = scmp.ne.s32.totalorder %s134, %s137
      %p143 = scmp.eq.s32.totalorder %s20, 0
      %p144 = por %p142, %p143
      %p145 = scmp.ne.s32.totalorder %s134, %s137
      %p146 = scmp.eq.s32.totalorder %s25, 1
      %p147 = por %p145, %p146
      %p148 = scmp.ne.s32.totalorder %s137, %s138
      %p149 = scmp.eq.s32.totalorder %s25, 0
      %p150 = por %p148, %p149
      %p151 = scmp.ne.s32.totalorder %s137, %s138
      %p152 = scmp.eq.s32.totalorder %s26, 1
      %p153 = por %p151, %p152
      %p155 = scmp.ne.s32.totalorder %s138, %s154
      %p156 = scmp.eq.s32.totalorder %s26, 0
      %p157 = por %p155, %p156
      %s158 = ssub.s32 %s20, %s27
      %p159 = scmp.eq.s32.totalorder %s158, 0
      %s161 = sadd.s32 %s160, 1
      %s162 = scalar_select %p159, %s160, %s161
      %p165 = pneg %p159
      %p166 = scmp.eq.s32.totalorder %s20, 1
      %p167 = por %p165, %p166
      %p168 = scmp.ne.s32.totalorder %s160, %s163
      %p169 = scmp.eq.s32.totalorder %s20, 0
      %p170 = por %p168, %p169
      %p171 = scmp.ne.s32.totalorder %s160, %s163
      %p172 = scmp.eq.s32.totalorder %s25, 1
      %p173 = por %p171, %p172
      %p174 = scmp.ne.s32.totalorder %s163, %s164
      %p175 = scmp.eq.s32.totalorder %s25, 0
      %p176 = por %p174, %p175
      %p177 = scmp.ne.s32.totalorder %s163, %s164
      %p178 = scmp.eq.s32.totalorder %s26, 1
      %p179 = por %p177, %p178
      %p181 = scmp.ne.s32.totalorder %s164, %s180
      %p182 = scmp.eq.s32.totalorder %s26, 0
      %p183 = por %p181, %p182
      %s184 = ssub.s32 %s20, %s27
      %p185 = scmp.eq.s32.totalorder %s184, 0
      %s187 = sadd.s32 %s186, 1
      %s188 = scalar_select %p185, %s186, %s187
      %p191 = pneg %p185
      %p192 = scmp.eq.s32.totalorder %s20, 1
      %p193 = por %p191, %p192
      %p194 = scmp.ne.s32.totalorder %s186, %s189
      %p195 = scmp.eq.s32.totalorder %s20, 0
      %p196 = por %p194, %p195
      %p197 = scmp.ne.s32.totalorder %s186, %s189
      %p198 = scmp.eq.s32.totalorder %s25, 1
      %p199 = por %p197, %p198
      %p200 = scmp.ne.s32.totalorder %s189, %s190
      %p201 = scmp.eq.s32.totalorder %s25, 0
      %p202 = por %p200, %p201
      %p203 = scmp.ne.s32.totalorder %s189, %s190
      %p204 = scmp.eq.s32.totalorder %s26, 1
      %p205 = por %p203, %p204
      %p207 = scmp.ne.s32.totalorder %s190, %s206
      %p208 = scmp.eq.s32.totalorder %s26, 0
      %p209 = por %p207, %p208
      %s210 = ssub.s32 %s20, %s27
      %p211 = scmp.eq.s32.totalorder %s210, 0
      %s213 = sadd.s32 %s212, 1
      %s214 = scalar_select %p211, %s212, %s213
      %p217 = pneg %p211
      %p218 = scmp.eq.s32.totalorder %s20, 1
      %p219 = por %p217, %p218
      %p220 = scmp.ne.s32.totalorder %s212, %s215
      %p221 = scmp.eq.s32.totalorder %s20, 0
      %p222 = por %p220, %p221
      %p223 = scmp.ne.s32.totalorder %s212, %s215
      %p224 = scmp.eq.s32.totalorder %s25, 1
      %p225 = por %p223, %p224
      %p226 = scmp.ne.s32.totalorder %s215, %s216
      %p227 = scmp.eq.s32.totalorder %s25, 0
      %p228 = por %p226, %p227
      %p229 = scmp.ne.s32.totalorder %s215, %s216
      %p230 = scmp.eq.s32.totalorder %s26, 1
      %p231 = por %p229, %p230
      %p233 = scmp.ne.s32.totalorder %s216, %s232
      %p234 = scmp.eq.s32.totalorder %s26, 0
      %p235 = por %p233, %p234
      %p236 = scmp.le.s32.totalorder 1, %s20
      %p237 = scmp.lt.s32.totalorder %s20, 3
      %p238 = pnand %p236, %p237
      %p239 = pneg %p238
      // Predicated region
      $region9: #{tpu_custom_call.1} parent=5 // pred_check
        _
      $region10: #{tpu_custom_call.1} parent=5 // pred_check_branch
        %241 = sbr.rel (%p238) target = $region12
      $region11: #{tpu_custom_call.1} parent=5 // pred_region
        %s242 = ssub.s32 %s20, 1
      $region12: #{tpu_custom_call.1} parent=5 // pred_fallthru
        _
      %p243 = scmp.lt.s32.totalorder %s20, 2
      // Predicated region
      $region13: #{tpu_custom_call.1} parent=5 // pred_check
        %p244 = pneg %p243
      $region14: #{tpu_custom_call.1} parent=5 // pred_check_branch
        %246 = sbr.rel (%p244) target = $region16
      $region15: #{tpu_custom_call.1} parent=5 // pred_region
        // Predicated region
        $region17: #{tpu_custom_call.1} parent=15 // pred_check
          %p247 = pneg %p40
        $region18: #{tpu_custom_call.1} parent=15 // pred_check_branch
          %249 = sbr.rel (%p247) target = $region20
        $region19: #{tpu_custom_call.1} parent=15 // pred_region
          %s250 = smul.u32 2, %s20
          %p251 = scmp.lt.s32.totalorder %s250, 3
          %s252 = scalar_select %p251, %s250, 3
          %s253 = smul.addr %s252, 2
          %s254 = smul.addr %s253, 8
          %s255 = scalar_lea.vmem %s0, %s254
          %s256 = smul.u32 2, %s20
        $region20: #{tpu_custom_call.1} parent=15 // pred_fallthru
          _
        // Predicated region
        $region21: #{tpu_custom_call.1} parent=15 // pred_check
          %p257 = pneg %p66
        $region22: #{tpu_custom_call.1} parent=15 // pred_check_branch
          %259 = sbr.rel (%p257) target = $region24
        $region23: #{tpu_custom_call.1} parent=15 // pred_region
          %s260 = smul.u32 2, %s20
          %p261 = scmp.lt.s32.totalorder %s260, 3
          %s262 = scalar_select %p261, %s260, 3
          %s263 = smul.addr %s262, 2
          %s264 = smul.addr %s263, 8
          %s265 = scalar_lea.vmem %s1, %s264
          %s266 = smul.u32 2, %s20
        $region24: #{tpu_custom_call.1} parent=15 // pred_fallthru
          _
        // Predicated region
        $region25: #{tpu_custom_call.1} parent=15 // pred_check
          %p267 = pneg %p92
        $region26: #{tpu_custom_call.1} parent=15 // pred_check_branch
          %269 = sbr.rel (%p267) target = $region28
        $region27: #{tpu_custom_call.1} parent=15 // pred_region
          %s270 = smul.u32 2, %s20
          %p271 = scmp.lt.s32.totalorder %s270, 3
          %s272 = scalar_select %p271, %s270, 3
          %s273 = scalar_lea.vmem %s2, %s272
          %s274 = smul.u32 2, %s20
        $region28: #{tpu_custom_call.1} parent=15 // pred_fallthru
          _
        // Predicated region
        $region29: #{tpu_custom_call.1} parent=15 // pred_check
          %p275 = pneg %p118
        $region30: #{tpu_custom_call.1} parent=15 // pred_check_branch
          %277 = sbr.rel (%p275) target = $region32
        $region31: #{tpu_custom_call.1} parent=15 // pred_region
          %s278 = smul.u32 2, %s20
          %p279 = scmp.lt.s32.totalorder %s278, 3
          %s280 = scalar_select %p279, %s278, 3
          %s281 = smul.addr %s280, 2
          %s282 = smul.addr %s281, 8
          %s283 = scalar_lea.vmem %s3, %s282
          %s284 = smul.u32 2, %s20
        $region32: #{tpu_custom_call.1} parent=15 // pred_fallthru
          _
        // Predicated region
        $region33: #{tpu_custom_call.1} parent=15 // pred_check
          %p285 = pneg %p144
        $region34: #{tpu_custom_call.1} parent=15 // pred_check_branch
          %287 = sbr.rel (%p285) target = $region36
        $region35: #{tpu_custom_call.1} parent=15 // pred_region
          %s288 = smul.u32 2, %s20
          %p289 = scmp.lt.s32.totalorder %s288, 3
          %s290 = scalar_select %p289, %s288, 3
          %s291 = scalar_lea.vmem %s4, %s290
          %s292 = smul.u32 2, %s20
        $region36: #{tpu_custom_call.1} parent=15 // pred_fallthru
          _
        // Predicated region
        $region37: #{tpu_custom_call.1} parent=15 // pred_check
          %p293 = pneg %p170
        $region38: #{tpu_custom_call.1} parent=15 // pred_check_branch
          %295 = sbr.rel (%p293) target = $region40
        $region39: #{tpu_custom_call.1} parent=15 // pred_region
          %s296 = smul.u32 2, %s20
          %p297 = scmp.lt.s32.totalorder %s296, 3
          %s298 = scalar_select %p297, %s296, 3
          %s299 = smul.addr %s298, 2
          %s300 = smul.addr %s299, 8
          %s301 = scalar_lea.vmem %s5, %s300
          %s302 = smul.u32 2, %s20
        $region40: #{tpu_custom_call.1} parent=15 // pred_fallthru
          _
      $region16: #{tpu_custom_call.1} parent=5 // pred_fallthru
        _
      %p303 = scmp.le.s32.totalorder 1, %s20
      %p304 = scmp.lt.s32.totalorder %s20, 3
      %p305 = pnand %p303, %p304
      %p306 = pneg %p305
      // Predicated region
      $region41: #{tpu_custom_call.1} parent=5 // pred_check
        _
      $region42: #{tpu_custom_call.1} parent=5 // pred_check_branch
        %308 = sbr.rel (%p305) target = $region44
      $region43: #{tpu_custom_call.1} parent=5 // pred_region
        %s309 = ssub.s32 %s20, 1
        %s310 = smul.u32 2, %s25
        %p311 = scmp.lt.s32.totalorder %s310, 3
        %s312 = scalar_select %p311, %s310, 3
        %s313 = smul.addr %s312, 2
        %s314 = smul.addr %s313, 8
        %s315 = scalar_lea.vmem %s0, %s314
        %p316 = pneg %p46
        %p317 = pneg %p43
        %s318 = smul.u32 2, %s25
        %p319 = scmp.lt.s32.totalorder %s318, 3
        %s320 = scalar_select %p319, %s318, 3
        %s321 = smul.addr %s320, 2
        %s322 = smul.addr %s321, 8
        %s323 = scalar_lea.vmem %s1, %s322
        %p324 = pneg %p72
        %p325 = pneg %p69
        %s326 = smul.u32 2, %s25
        %p327 = scmp.lt.s32.totalorder %s326, 3
        %s328 = scalar_select %p327, %s326, 3
        %s329 = scalar_lea.vmem %s2, %s328
        %p330 = pneg %p98
        %p331 = pneg %p95
        %s332 = smul.u32 2, %s25
        %p333 = scmp.lt.s32.totalorder %s332, 3
        %s334 = scalar_select %p333, %s332, 3
        %s335 = smul.addr %s334, 2
        %s336 = smul.addr %s335, 8
        %s337 = scalar_lea.vmem %s3, %s336
        %p338 = pneg %p124
        %p339 = pneg %p121
        %s340 = smul.u32 2, %s25
        %p341 = scmp.lt.s32.totalorder %s340, 3
        %s342 = scalar_select %p341, %s340, 3
        %s343 = scalar_lea.vmem %s4, %s342
        %p344 = pneg %p150
        %p345 = pneg %p147
        %s346 = smul.u32 2, %s25
        %p347 = scmp.lt.s32.totalorder %s346, 3
        %s348 = scalar_select %p347, %s346, 3
        %s349 = smul.addr %s348, 2
        %s350 = smul.addr %s349, 8
        %s351 = scalar_lea.vmem %s5, %s350
        %p352 = pneg %p176
        %p353 = pneg %p173
        %p354 = pneg %p202
        %p355 = pneg %p199
        %s356 = sand.u32 %s189, 1
        %s357 = scalar_lea.sflag [#allocation3], %s356
        %s358 = sand.u32 %s189, 1
        %s359 = smul.addr %s358, 32
        %s360 = scalar_lea.vmem [#allocation2], %s359
        %p361 = pneg %p228
        %p362 = pneg %p225
        %s363 = sand.u32 %s215, 1
        %s364 = scalar_lea.sflag [#allocation5], %s363
        %s365 = sand.u32 %s215, 1
        %s366 = smul.addr %s365, 32
        %s367 = scalar_lea.vmem [#allocation4], %s366
        %s368 = smul.u32 2, %s25
        %p369 = scmp.lt.s32.totalorder %s368, 3
        %s370 = scalar_select %p369, %s368, 3
        %s371 = smul.addr %s370, 2
        %s372 = smul.addr %s371, 8
        %s373 = scalar_lea.vmem %s0, %s372
        %s374 = smul.u32 2, %s25
        %s375 = smul.u32 2, %s25
        %p376 = scmp.lt.s32.totalorder %s375, 3
        %s377 = scalar_select %p376, %s375, 3
        %s378 = smul.addr %s377, 2
        %s379 = smul.addr %s378, 8
        %s380 = scalar_lea.vmem %s1, %s379
        %s381 = smul.u32 2, %s25
        %s382 = smul.u32 2, %s25
        %p383 = scmp.lt.s32.totalorder %s382, 3
        %s384 = scalar_select %p383, %s382, 3
        %s385 = scalar_lea.vmem %s2, %s384
        %s386 = smul.u32 2, %s25
        %s387 = smul.u32 2, %s25
        %p388 = scmp.lt.s32.totalorder %s387, 3
        %s389 = scalar_select %p388, %s387, 3
        %s390 = smul.addr %s389, 2
        %s391 = smul.addr %s390, 8
        %s392 = scalar_lea.vmem %s3, %s391
        %s393 = smul.u32 2, %s25
        %s394 = smul.u32 2, %s25
        %p395 = scmp.lt.s32.totalorder %s394, 3
        %s396 = scalar_select %p395, %s394, 3
        %s397 = scalar_lea.vmem %s4, %s396
        %s398 = smul.u32 2, %s25
        %s399 = smul.u32 2, %s25
        %p400 = scmp.lt.s32.totalorder %s399, 3
        %s401 = scalar_select %p400, %s399, 3
        %s402 = smul.addr %s401, 2
        %s403 = smul.addr %s402, 8
        %s404 = scalar_lea.vmem %s5, %s403
        %s405 = smul.u32 2, %s25
        %s406 = smul.u32 2, %s25
        %s407 = smul.u32 2, %s25
        %v408 = vld [vmem:[%s373] sm:$0xff]
        %v409 = vld [vmem:[%s373 + $0x8] sm:$0xff]
        %v410 = vld [vmem:[%s380] sm:$0xff]
        %v411 = vld [vmem:[%s380 + $0x8] sm:$0xff]
        %v412 = vld [vmem:[%s385] sm:$0x1]
        %v413 = vld [vmem:[%s392] sm:$0xff]
        %v414 = vld [vmem:[%s392 + $0x8] sm:$0xff]
        %v415 = vld [vmem:[%s397] sm:$0x1]
        %v416 = vld [vmem:[%s404] sm:$0xff]
        %v417 = vld [vmem:[%s404 + $0x8] sm:$0xff]
        %418 = vmatprep.subr.mxu0 0.0
        %419 = vmatpush1.xpose.msra.mxu0 %v410
        %420 = vmatprep.subr.mxu0 0.0
        %421 = vmatpush1.xpose.msra.mxu0 %v411
        %422 = vmatprep.subr.mxu0 0.0
        %423 = vmatpush1.xpose.msra.mxu0 0.0
        %424 = vmatprep.subr.mxu0 0.0
        %425 = vmatpush1.xpose.msra.mxu0 0.0
        %426 = vmatprep.subr.mxu0 0.0
        %427 = vmatpush1.xpose.msra.mxu0 0.0
        %428 = vmatprep.subr.mxu0 0.0
        %429 = vmatpush1.xpose.msra.mxu0 0.0
        %430 = vmatprep.subr.mxu0 0.0
        %431 = vmatpush1.xpose.msra.mxu0 0.0
        %432 = vmatprep.subr.mxu0 0.0
        %433 = vmatpush1.xpose.msra.mxu0 0.0
        %434 = vmatprep.subr.mxu0 0.0
        %435 = vmatpush1.xpose.msra.mxu0 0.0
        %436 = vmatprep.subr.mxu0 0.0
        %437 = vmatpush1.xpose.msra.mxu0 0.0
        %438 = vmatprep.subr.mxu0 0.0
        %439 = vmatpush1.xpose.msra.mxu0 0.0
        %440 = vmatprep.subr.mxu0 0.0
        %441 = vmatpush1.xpose.msra.mxu0 0.0
        %442 = vmatprep.subr.mxu0 0.0
        %443 = vmatpush1.xpose.msra.mxu0 0.0
        %444 = vmatprep.subr.mxu0 0.0
        %445 = vmatpush1.xpose.msra.mxu0 0.0
        %446 = vmatprep.subr.mxu0 0.0
        %447 = vmatpush1.xpose.msra.mxu0 0.0
        %448 = vmatprep.subr.mxu0 0.0
        %449 = vmatpush1.xpose.msra.mxu0 0.0
        %450 = vmatprep.subr.mxu0 0.0
        %451 = vmatpush1.xpose.msra.mxu0 0.0
        %452 = vmatprep.subr.mxu0 0.0
        %453 = vmatpush1.xpose.msra.mxu0 0.0
        %454 = vmatprep.subr.mxu0 0.0
        %455 = vmatpush1.xpose.msra.mxu0 0.0
        %456 = vmatprep.subr.mxu0 0.0
        %457 = vmatpush1.xpose.msra.mxu0 0.0
        %458 = vmatprep.subr.mxu0 0.0
        %459 = vmatpush1.xpose.msra.mxu0 0.0
        %460 = vmatprep.subr.mxu0 0.0
        %461 = vmatpush1.xpose.msra.mxu0 0.0
        %462 = vmatprep.subr.mxu0 0.0
        %463 = vmatpush1.xpose.msra.mxu0 0.0
        %464 = vmatprep.subr.mxu0 0.0
        %465 = vmatpush1.xpose.msra.mxu0 0.0
        %466 = vmatprep.subr.mxu0 0.0
        %467 = vmatpush1.xpose.msra.mxu0 0.0
        %468 = vmatprep.subr.mxu0 0.0
        %469 = vmatpush1.xpose.msra.mxu0 0.0
        %470 = vmatprep.subr.mxu0 0.0
        %471 = vmatpush1.xpose.msra.mxu0 0.0
        %472 = vmatprep.subr.mxu0 0.0
        %473 = vmatpush1.xpose.msra.mxu0 0.0
        %474 = vmatprep.subr.mxu0 0.0
        %475 = vmatpush1.xpose.msra.mxu0 0.0
        %476 = vmatprep.subr.mxu0 0.0
        %477 = vmatpush1.xpose.msra.mxu0 0.0
        %478 = vmatprep.subr.mxu0 0.0
        %479 = vmatpush1.xpose.msra.mxu0 0.0
        %480 = vmatprep.subr.mxu0 0.0
        %481 = vmatpush1.xpose.msra.mxu0 0.0
        %482 = vmatprep.mubr.f32.mxu0 0.0
        %483 = vmatmul.mubr.f32.gmra.mrb[0].mxu0 %v408
        %v484 = vpop.f32.mrb[0].mxu0
        %v485 = vadd.f32 0.0, %v484
        %v486 = vpop.f32.mrb[0].mxu0
        %487 = vmatprep.mubr.f32.mxu0 0.0
        %488 = vmatmul.mubr.f32.gmra.mrb[0].mxu0 %v409
        %v489 = vpop.f32.mrb[0].mxu0
        %v490 = vadd.f32 0.0, %v489
        %v491 = vpop.f32.mrb[0].mxu0
        %492 = vdwg.mxu0
        %v493 = vmul.f32 %v485, 0.17677669
        %v494 = vmul.f32 %v490, 0.17677669
        %495 = vmatprep.subr.mxu0 0.0
        %496 = vmatpush1.xpose.msra.mxu0 %v408
        %497 = vmatprep.subr.mxu0 0.0
        %498 = vmatpush1.xpose.msra.mxu0 %v409
        %499 = vmatprep.subr.mxu0 0.0
        %500 = vmatpush1.xpose.msra.mxu0 0.0
        %501 = vmatprep.subr.mxu0 0.0
        %502 = vmatpush1.xpose.msra.mxu0 0.0
        %503 = vmatprep.subr.mxu0 0.0
        %504 = vmatpush1.xpose.msra.mxu0 0.0
        %505 = vmatprep.subr.mxu0 0.0
        %506 = vmatpush1.xpose.msra.mxu0 0.0
        %507 = vmatprep.subr.mxu0 0.0
        %508 = vmatpush1.xpose.msra.mxu0 0.0
        %509 = vmatprep.subr.mxu0 0.0
        %510 = vmatpush1.xpose.msra.mxu0 0.0
        %511 = vmatprep.subr.mxu0 0.0
        %512 = vmatpush1.xpose.msra.mxu0 0.0
        %513 = vmatprep.subr.mxu0 0.0
        %514 = vmatpush1.xpose.msra.mxu0 0.0
        %515 = vmatprep.subr.mxu0 0.0
        %516 = vmatpush1.xpose.msra.mxu0 0.0
        %517 = vmatprep.subr.mxu0 0.0
        %518 = vmatpush1.xpose.msra.mxu0 0.0
        %519 = vmatprep.subr.mxu0 0.0
        %520 = vmatpush1.xpose.msra.mxu0 0.0
        %521 = vmatprep.subr.mxu0 0.0
        %522 = vmatpush1.xpose.msra.mxu0 0.0
        %523 = vmatprep.subr.mxu0 0.0
        %524 = vmatpush1.xpose.msra.mxu0 0.0
        %525 = vmatprep.subr.mxu0 0.0
        %526 = vmatpush1.xpose.msra.mxu0 0.0
        %527 = vmatprep.subr.mxu0 0.0
        %528 = vmatpush1.xpose.msra.mxu0 0.0
        %529 = vmatprep.subr.mxu0 0.0
        %530 = vmatpush1.xpose.msra.mxu0 0.0
        %531 = vmatprep.subr.mxu0 0.0
        %532 = vmatpush1.xpose.msra.mxu0 0.0
        %533 = vmatprep.subr.mxu0 0.0
        %534 = vmatpush1.xpose.msra.mxu0 0.0
        %535 = vmatprep.subr.mxu0 0.0
        %536 = vmatpush1.xpose.msra.mxu0 0.0
        %537 = vmatprep.subr.mxu0 0.0
        %538 = vmatpush1.xpose.msra.mxu0 0.0
        %539 = vmatprep.subr.mxu0 0.0
        %540 = vmatpush1.xpose.msra.mxu0 0.0
        %541 = vmatprep.subr.mxu0 0.0
        %542 = vmatpush1.xpose.msra.mxu0 0.0
        %543 = vmatprep.subr.mxu0 0.0
        %544 = vmatpush1.xpose.msra.mxu0 0.0
        %545 = vmatprep.subr.mxu0 0.0
        %546 = vmatpush1.xpose.msra.mxu0 0.0
        %547 = vmatprep.subr.mxu0 0.0
        %548 = vmatpush1.xpose.msra.mxu0 0.0
        %549 = vmatprep.subr.mxu0 0.0
        %550 = vmatpush1.xpose.msra.mxu0 0.0
        %551 = vmatprep.subr.mxu0 0.0
        %552 = vmatpush1.xpose.msra.mxu0 0.0
        %553 = vmatprep.subr.mxu0 0.0
        %554 = vmatpush1.xpose.msra.mxu0 0.0
        %555 = vmatprep.subr.mxu0 0.0
        %556 = vmatpush1.xpose.msra.mxu0 0.0
        %557 = vmatprep.subr.mxu0 0.0
        %558 = vmatpush1.xpose.msra.mxu0 0.0
        %559 = vmatprep.mubr.f32.mxu0 0.0
        %560 = vmatmul.mubr.f32.gmra.mrb[0].mxu0 %v410
        %v561 = vpop.f32.mrb[0].mxu0
        %v562 = vadd.f32 0.0, %v561
        %v563 = vpop.f32.mrb[0].mxu0
        %564 = vmatprep.mubr.f32.mxu0 0.0
        %565 = vmatmul.mubr.f32.gmra.mrb[0].mxu0 %v411
        %v566 = vpop.f32.mrb[0].mxu0
        %v567 = vadd.f32 0.0, %v566
        %v568 = vpop.f32.mrb[0].mxu0
        %569 = vdwg.mxu0
        %v570 = vmul.f32 %v562, 0.17677669
        %v571 = vmul.f32 %v567, 0.17677669
        %v573 = vlaneseq
        %v574 = vshrl.u32 %v573, 7
        %v575 = vsub.s32 0, %v574
        %v576 = vrot.slane %v415, %v575
        %v578 = vmul.f32 %v493, %v576
        %v579 = vmul.f32 %v494, %v576
        %vm580 = vcmask 130048
        %v581 = vsel %vm580, %v578, -inf
        %582 = vmax.xlane.f32.xlu0 %v581
        %v583 = vpop.xlane.xlu0 %582
        %v584 = vsel %vm580, %v579, -inf
        %585 = vmax.xlane.f32.xlu0 %v584
        %v586 = vpop.xlane.xlu0 %585
        %v587 = vsub.f32 %v578, %v583
        %v588 = vsub.f32 %v579, %v586
        %v589 = vmul.f32 %v587, 1.442695
        %v590 = vpow.pop %v589
        %v591 = vmul.f32 %v588, 1.442695
        %v592 = vpow.pop %v591
        %v593 = vmul.f32 %v590, %v576
        %v594 = vmul.f32 %v592, %v576
        %v595 = vsel %vm580, %v593, 0.0
        %596 = vadd.xlane.f32.xlu0 %v595
        %v597 = vpop.xlane.xlu0 %596
        %v598 = vsel %vm580, %v594, 0.0
        %599 = vadd.xlane.f32.xlu0 %v598
        %v600 = vpop.xlane.xlu0 %599
        %v601 = vadd.f32 %v597, 1e-13
        %v602 = vadd.f32 %v600, 1e-13
        %v603 = vrcp.pop %v601
        %v604 = vrcp.pop %v602
        %v605 = vmul.f32 %v593, %v603
        %v606 = vmul.f32 %v594, %v604
        %v608 = vlaneseq
        %v609 = vshrl.u32 %v608, 7
        %v610 = vsub.s32 0, %v609
        %v611 = vrot.slane %v412, %v610
        %v613 = vmul.f32 %v570, %v611
        %v614 = vmul.f32 %v571, %v611
        %v615 = vsel %vm580, %v613, -inf
        %616 = vmax.xlane.f32.xlu0 %v615
        %v617 = vpop.xlane.xlu0 %616
        %v618 = vsel %vm580, %v614, -inf
        %619 = vmax.xlane.f32.xlu0 %v618
        %v620 = vpop.xlane.xlu0 %619
        %v621 = vsub.f32 %v613, %v617
        %v622 = vsub.f32 %v614, %v620
        %v623 = vmul.f32 %v621, 1.442695
        %v624 = vpow.pop %v623
        %v625 = vmul.f32 %v622, 1.442695
        %v626 = vpow.pop %v625
        %v627 = vmul.f32 %v624, %v611
        %v628 = vmul.f32 %v626, %v611
        %v629 = vsel %vm580, %v627, 0.0
        %630 = vadd.xlane.f32.xlu0 %v629
        %v631 = vpop.xlane.xlu0 %630
        %v632 = vsel %vm580, %v628, 0.0
        %633 = vadd.xlane.f32.xlu0 %v632
        %v634 = vpop.xlane.xlu0 %633
        %v635 = vadd.f32 %v631, 1e-13
        %v636 = vadd.f32 %v634, 1e-13
        %v637 = vrcp.pop %v635
        %v638 = vrcp.pop %v636
        %v639 = vmul.f32 %v627, %v637
        %v640 = vmul.f32 %v628, %v638
        %v642 = vsel %vm580, %v605, 0
        %v645 = vsel %vm580, %v606, 0
        %647 = vmatprep.subr.mxu0 0.0
        %648 = vmatpush1.msra.mxu0 %v410
        %649 = vmatprep.subr.mxu0 0.0
        %650 = vmatpush1.msra.mxu0 %v411
        %651 = vmatprep.subr.mxu0 0.0
        %652 = vmatpush1.msra.mxu0 0.0
        %653 = vmatprep.subr.mxu0 0.0
        %654 = vmatpush1.msra.mxu0 0.0
        %655 = vmatprep.subr.mxu0 0.0
        %656 = vmatpush1.msra.mxu0 0.0
        %657 = vmatprep.subr.mxu0 0.0
        %658 = vmatpush1.msra.mxu0 0.0
        %659 = vmatprep.subr.mxu0 0.0
        %660 = vmatpush1.msra.mxu0 0.0
        %661 = vmatprep.subr.mxu0 0.0
        %662 = vmatpush1.msra.mxu0 0.0
        %663 = vmatprep.subr.mxu0 0.0
        %664 = vmatpush1.msra.mxu0 0.0
        %665 = vmatprep.subr.mxu0 0.0
        %666 = vmatpush1.msra.mxu0 0.0
        %667 = vmatprep.subr.mxu0 0.0
        %668 = vmatpush1.msra.mxu0 0.0
        %669 = vmatprep.subr.mxu0 0.0
        %670 = vmatpush1.msra.mxu0 0.0
        %671 = vmatprep.subr.mxu0 0.0
        %672 = vmatpush1.msra.mxu0 0.0
        %673 = vmatprep.subr.mxu0 0.0
        %674 = vmatpush1.msra.mxu0 0.0
        %675 = vmatprep.subr.mxu0 0.0
        %676 = vmatpush1.msra.mxu0 0.0
        %677 = vmatprep.subr.mxu0 0.0
        %678 = vmatpush1.msra.mxu0 0.0
        %679 = vmatprep.subr.mxu0 0.0
        %680 = vmatpush1.msra.mxu0 0.0
        %681 = vmatprep.subr.mxu0 0.0
        %682 = vmatpush1.msra.mxu0 0.0
        %683 = vmatprep.subr.mxu0 0.0
        %684 = vmatpush1.msra.mxu0 0.0
        %685 = vmatprep.subr.mxu0 0.0
        %686 = vmatpush1.msra.mxu0 0.0
        %687 = vmatprep.subr.mxu0 0.0
        %688 = vmatpush1.msra.mxu0 0.0
        %689 = vmatprep.subr.mxu0 0.0
        %690 = vmatpush1.msra.mxu0 0.0
        %691 = vmatprep.subr.mxu0 0.0
        %692 = vmatpush1.msra.mxu0 0.0
        %693 = vmatprep.subr.mxu0 0.0
        %694 = vmatpush1.msra.mxu0 0.0
        %695 = vmatprep.subr.mxu0 0.0
        %696 = vmatpush1.msra.mxu0 0.0
        %697 = vmatprep.subr.mxu0 0.0
        %698 = vmatpush1.msra.mxu0 0.0
        %699 = vmatprep.subr.mxu0 0.0
        %700 = vmatpush1.msra.mxu0 0.0
        %701 = vmatprep.subr.mxu0 0.0
        %702 = vmatpush1.msra.mxu0 0.0
        %703 = vmatprep.subr.mxu0 0.0
        %704 = vmatpush1.msra.mxu0 0.0
        %705 = vmatprep.subr.mxu0 0.0
        %706 = vmatpush1.msra.mxu0 0.0
        %707 = vmatprep.subr.mxu0 0.0
        %708 = vmatpush1.msra.mxu0 0.0
        %709 = vmatprep.subr.mxu0 0.0
        %710 = vmatpush1.msra.mxu0 0.0
        %711 = vmatprep.mubr.f32.mxu0 0.0
        %712 = vmatmul.mubr.f32.gmra.mrb[0].mxu0 %v642
        %v713 = vpop.f32.mrb[0].mxu0
        %v714 = vadd.f32 0.0, %v713
        %v715 = vpop.f32.mrb[0].mxu0
        %716 = vmatprep.mubr.f32.mxu0 0.0
        %717 = vmatmul.mubr.f32.gmra.mrb[0].mxu0 %v645
        %v718 = vpop.f32.mrb[0].mxu0
        %v719 = vadd.f32 0.0, %v718
        %v720 = vpop.f32.mrb[0].mxu0
        %721 = vdwg.mxu0
        %723 = vset.pattern.permute.xlu0 0
        %724 = vperm.xlu0 %723, %v413
        %v725 = vpop.permute.xlu0 %724
        %728 = vset.pattern.permute.xlu0 0
        %729 = vperm.xlu0 %728, %v414
        %v730 = vpop.permute.xlu0 %729
        %v732 = vmul.f32 %v714, %v725
        %v733 = vmul.f32 %v719, %v730
        %v735 = vsel %vm580, %v639, 0
        %v738 = vsel %vm580, %v640, 0
        %740 = vmatprep.subr.mxu0 0.0
        %741 = vmatpush1.msra.mxu0 %v408
        %742 = vmatprep.subr.mxu0 0.0
        %743 = vmatpush1.msra.mxu0 %v409
        %744 = vmatprep.subr.mxu0 0.0
        %745 = vmatpush1.msra.mxu0 0.0
        %746 = vmatprep.subr.mxu0 0.0
        %747 = vmatpush1.msra.mxu0 0.0
        %748 = vmatprep.subr.mxu0 0.0
        %749 = vmatpush1.msra.mxu0 0.0
        %750 = vmatprep.subr.mxu0 0.0
        %751 = vmatpush1.msra.mxu0 0.0
        %752 = vmatprep.subr.mxu0 0.0
        %753 = vmatpush1.msra.mxu0 0.0
        %754 = vmatprep.subr.mxu0 0.0
        %755 = vmatpush1.msra.mxu0 0.0
        %756 = vmatprep.subr.mxu0 0.0
        %757 = vmatpush1.msra.mxu0 0.0
        %758 = vmatprep.subr.mxu0 0.0
        %759 = vmatpush1.msra.mxu0 0.0
        %760 = vmatprep.subr.mxu0 0.0
        %761 = vmatpush1.msra.mxu0 0.0
        %762 = vmatprep.subr.mxu0 0.0
        %763 = vmatpush1.msra.mxu0 0.0
        %764 = vmatprep.subr.mxu0 0.0
        %765 = vmatpush1.msra.mxu0 0.0
        %766 = vmatprep.subr.mxu0 0.0
        %767 = vmatpush1.msra.mxu0 0.0
        %768 = vmatprep.subr.mxu0 0.0
        %769 = vmatpush1.msra.mxu0 0.0
        %770 = vmatprep.subr.mxu0 0.0
        %771 = vmatpush1.msra.mxu0 0.0
        %772 = vmatprep.subr.mxu0 0.0
        %773 = vmatpush1.msra.mxu0 0.0
        %774 = vmatprep.subr.mxu0 0.0
        %775 = vmatpush1.msra.mxu0 0.0
        %776 = vmatprep.subr.mxu0 0.0
        %777 = vmatpush1.msra.mxu0 0.0
        %778 = vmatprep.subr.mxu0 0.0
        %779 = vmatpush1.msra.mxu0 0.0
        %780 = vmatprep.subr.mxu0 0.0
        %781 = vmatpush1.msra.mxu0 0.0
        %782 = vmatprep.subr.mxu0 0.0
        %783 = vmatpush1.msra.mxu0 0.0
        %784 = vmatprep.subr.mxu0 0.0
        %785 = vmatpush1.msra.mxu0 0.0
        %786 = vmatprep.subr.mxu0 0.0
        %787 = vmatpush1.msra.mxu0 0.0
        %788 = vmatprep.subr.mxu0 0.0
        %789 = vmatpush1.msra.mxu0 0.0
        %790 = vmatprep.subr.mxu0 0.0
        %791 = vmatpush1.msra.mxu0 0.0
        %792 = vmatprep.subr.mxu0 0.0
        %793 = vmatpush1.msra.mxu0 0.0
        %794 = vmatprep.subr.mxu0 0.0
        %795 = vmatpush1.msra.mxu0 0.0
        %796 = vmatprep.subr.mxu0 0.0
        %797 = vmatpush1.msra.mxu0 0.0
        %798 = vmatprep.subr.mxu0 0.0
        %799 = vmatpush1.msra.mxu0 0.0
        %800 = vmatprep.subr.mxu0 0.0
        %801 = vmatpush1.msra.mxu0 0.0
        %802 = vmatprep.subr.mxu0 0.0
        %803 = vmatpush1.msra.mxu0 0.0
        %804 = vmatprep.mubr.f32.mxu0 0.0
        %805 = vmatmul.mubr.f32.gmra.mrb[0].mxu0 %v735
        %v806 = vpop.f32.mrb[0].mxu0
        %v807 = vadd.f32 0.0, %v806
        %v808 = vpop.f32.mrb[0].mxu0
        %809 = vmatprep.mubr.f32.mxu0 0.0
        %810 = vmatmul.mubr.f32.gmra.mrb[0].mxu0 %v738
        %v811 = vpop.f32.mrb[0].mxu0
        %v812 = vadd.f32 0.0, %v811
        %v813 = vpop.f32.mrb[0].mxu0
        %814 = vdwg.mxu0
        %816 = vset.pattern.permute.xlu0 0
        %817 = vperm.xlu0 %816, %v416
        %v818 = vpop.permute.xlu0 %817
        %821 = vset.pattern.permute.xlu0 0
        %822 = vperm.xlu0 %821, %v417
        %v823 = vpop.permute.xlu0 %822
        %v825 = vmul.f32 %v807, %v818
        %v826 = vmul.f32 %v812, %v823
        %827 = vst [vmem:[%s360] sm:$0xff] %v732
        %828 = vst [vmem:[%s360 + $0x8] sm:$0xff] %v733
        %829 = vst [vmem:[%s367] sm:$0xff] %v825
        %830 = vst [vmem:[%s367 + $0x8] sm:$0xff] %v826
        %s831 = scalar_lea.vmem %s373, 16
        %v832 = vld [vmem:[%s831] sm:$0xff]
        %v833 = vld [vmem:[%s831 + $0x8] sm:$0xff]
        %s834 = scalar_lea.vmem %s380, 16
        %v835 = vld [vmem:[%s834] sm:$0xff]
        %v836 = vld [vmem:[%s834 + $0x8] sm:$0xff]
        %s837 = scalar_lea.vmem %s385, 1
        %v838 = vld [vmem:[%s837] sm:$0x1]
        %s839 = scalar_lea.vmem %s392, 16
        %v840 = vld [vmem:[%s839] sm:$0xff]
        %v841 = vld [vmem:[%s839 + $0x8] sm:$0xff]
        %s842 = scalar_lea.vmem %s397, 1
        %v843 = vld [vmem:[%s842] sm:$0x1]
        %s844 = scalar_lea.vmem %s404, 16
        %v845 = vld [vmem:[%s844] sm:$0xff]
        %v846 = vld [vmem:[%s844 + $0x8] sm:$0xff]
        %847 = vmatprep.subr.mxu0 0.0
        %848 = vmatpush1.xpose.msra.mxu0 %v835
        %849 = vmatprep.subr.mxu0 0.0
        %850 = vmatpush1.xpose.msra.mxu0 %v836
        %851 = vmatprep.subr.mxu0 0.0
        %852 = vmatpush1.xpose.msra.mxu0 0.0
        %853 = vmatprep.subr.mxu0 0.0
        %854 = vmatpush1.xpose.msra.mxu0 0.0
        %855 = vmatprep.subr.mxu0 0.0
        %856 = vmatpush1.xpose.msra.mxu0 0.0
        %857 = vmatprep.subr.mxu0 0.0
        %858 = vmatpush1.xpose.msra.mxu0 0.0
        %859 = vmatprep.subr.mxu0 0.0
        %860 = vmatpush1.xpose.msra.mxu0 0.0
        %861 = vmatprep.subr.mxu0 0.0
        %862 = vmatpush1.xpose.msra.mxu0 0.0
        %863 = vmatprep.subr.mxu0 0.0
        %864 = vmatpush1.xpose.msra.mxu0 0.0
        %865 = vmatprep.subr.mxu0 0.0
        %866 = vmatpush1.xpose.msra.mxu0 0.0
        %867 = vmatprep.subr.mxu0 0.0
        %868 = vmatpush1.xpose.msra.mxu0 0.0
        %869 = vmatprep.subr.mxu0 0.0
        %870 = vmatpush1.xpose.msra.mxu0 0.0
        %871 = vmatprep.subr.mxu0 0.0
        %872 = vmatpush1.xpose.msra.mxu0 0.0
        %873 = vmatprep.subr.mxu0 0.0
        %874 = vmatpush1.xpose.msra.mxu0 0.0
        %875 = vmatprep.subr.mxu0 0.0
        %876 = vmatpush1.xpose.msra.mxu0 0.0
        %877 = vmatprep.subr.mxu0 0.0
        %878 = vmatpush1.xpose.msra.mxu0 0.0
        %879 = vmatprep.subr.mxu0 0.0
        %880 = vmatpush1.xpose.msra.mxu0 0.0
        %881 = vmatprep.subr.mxu0 0.0
        %882 = vmatpush1.xpose.msra.mxu0 0.0
        %883 = vmatprep.subr.mxu0 0.0
        %884 = vmatpush1.xpose.msra.mxu0 0.0
        %885 = vmatprep.subr.mxu0 0.0
        %886 = vmatpush1.xpose.msra.mxu0 0.0
        %887 = vmatprep.subr.mxu0 0.0
        %888 = vmatpush1.xpose.msra.mxu0 0.0
        %889 = vmatprep.subr.mxu0 0.0
        %890 = vmatpush1.xpose.msra.mxu0 0.0
        %891 = vmatprep.subr.mxu0 0.0
        %892 = vmatpush1.xpose.msra.mxu0 0.0
        %893 = vmatprep.subr.mxu0 0.0
        %894 = vmatpush1.xpose.msra.mxu0 0.0
        %895 = vmatprep.subr.mxu0 0.0
        %896 = vmatpush1.xpose.msra.mxu0 0.0
        %897 = vmatprep.subr.mxu0 0.0
        %898 = vmatpush1.xpose.msra.mxu0 0.0
        %899 = vmatprep.subr.mxu0 0.0
        %900 = vmatpush1.xpose.msra.mxu0 0.0
        %901 = vmatprep.subr.mxu0 0.0
        %902 = vmatpush1.xpose.msra.mxu0 0.0
        %903 = vmatprep.subr.mxu0 0.0
        %904 = vmatpush1.xpose.msra.mxu0 0.0
        %905 = vmatprep.subr.mxu0 0.0
        %906 = vmatpush1.xpose.msra.mxu0 0.0
        %907 = vmatprep.subr.mxu0 0.0
        %908 = vmatpush1.xpose.msra.mxu0 0.0
        %909 = vmatprep.subr.mxu0 0.0
        %910 = vmatpush1.xpose.msra.mxu0 0.0
        %911 = vmatprep.mubr.f32.mxu0 0.0
        %912 = vmatmul.mubr.f32.gmra.mrb[0].mxu0 %v832
        %v913 = vpop.f32.mrb[0].mxu0
        %v914 = vadd.f32 0.0, %v913
        %v915 = vpop.f32.mrb[0].mxu0
        %916 = vmatprep.mubr.f32.mxu0 0.0
        %917 = vmatmul.mubr.f32.gmra.mrb[0].mxu0 %v833
        %v918 = vpop.f32.mrb[0].mxu0
        %v919 = vadd.f32 0.0, %v918
        %v920 = vpop.f32.mrb[0].mxu0
        %921 = vdwg.mxu0
        %v922 = vmul.f32 %v914, 0.17677669
        %v923 = vmul.f32 %v919, 0.17677669
        %924 = vmatprep.subr.mxu0 0.0
        %925 = vmatpush1.xpose.msra.mxu0 %v832
        %926 = vmatprep.subr.mxu0 0.0
        %927 = vmatpush1.xpose.msra.mxu0 %v833
        %928 = vmatprep.subr.mxu0 0.0
        %929 = vmatpush1.xpose.msra.mxu0 0.0
        %930 = vmatprep.subr.mxu0 0.0
        %931 = vmatpush1.xpose.msra.mxu0 0.0
        %932 = vmatprep.subr.mxu0 0.0
        %933 = vmatpush1.xpose.msra.mxu0 0.0
        %934 = vmatprep.subr.mxu0 0.0
        %935 = vmatpush1.xpose.msra.mxu0 0.0
        %936 = vmatprep.subr.mxu0 0.0
        %937 = vmatpush1.xpose.msra.mxu0 0.0
        %938 = vmatprep.subr.mxu0 0.0
        %939 = vmatpush1.xpose.msra.mxu0 0.0
        %940 = vmatprep.subr.mxu0 0.0
        %941 = vmatpush1.xpose.msra.mxu0 0.0
        %942 = vmatprep.subr.mxu0 0.0
        %943 = vmatpush1.xpose.msra.mxu0 0.0
        %944 = vmatprep.subr.mxu0 0.0
        %945 = vmatpush1.xpose.msra.mxu0 0.0
        %946 = vmatprep.subr.mxu0 0.0
        %947 = vmatpush1.xpose.msra.mxu0 0.0
        %948 = vmatprep.subr.mxu0 0.0
        %949 = vmatpush1.xpose.msra.mxu0 0.0
        %950 = vmatprep.subr.mxu0 0.0
        %951 = vmatpush1.xpose.msra.mxu0 0.0
        %952 = vmatprep.subr.mxu0 0.0
        %953 = vmatpush1.xpose.msra.mxu0 0.0
        %954 = vmatprep.subr.mxu0 0.0
        %955 = vmatpush1.xpose.msra.mxu0 0.0
        %956 = vmatprep.subr.mxu0 0.0
        %957 = vmatpush1.xpose.msra.mxu0 0.0
        %958 = vmatprep.subr.mxu0 0.0
        %959 = vmatpush1.xpose.msra.mxu0 0.0
        %960 = vmatprep.subr.mxu0 0.0
        %961 = vmatpush1.xpose.msra.mxu0 0.0
        %962 = vmatprep.subr.mxu0 0.0
        %963 = vmatpush1.xpose.msra.mxu0 0.0
        %964 = vmatprep.subr.mxu0 0.0
        %965 = vmatpush1.xpose.msra.mxu0 0.0
        %966 = vmatprep.subr.mxu0 0.0
        %967 = vmatpush1.xpose.msra.mxu0 0.0
        %968 = vmatprep.subr.mxu0 0.0
        %969 = vmatpush1.xpose.msra.mxu0 0.0
        %970 = vmatprep.subr.mxu0 0.0
        %971 = vmatpush1.xpose.msra.mxu0 0.0
        %972 = vmatprep.subr.mxu0 0.0
        %973 = vmatpush1.xpose.msra.mxu0 0.0
        %974 = vmatprep.subr.mxu0 0.0
        %975 = vmatpush1.xpose.msra.mxu0 0.0
        %976 = vmatprep.subr.mxu0 0.0
        %977 = vmatpush1.xpose.msra.mxu0 0.0
        %978 = vmatprep.subr.mxu0 0.0
        %979 = vmatpush1.xpose.msra.mxu0 0.0
        %980 = vmatprep.subr.mxu0 0.0
        %981 = vmatpush1.xpose.msra.mxu0 0.0
        %982 = vmatprep.subr.mxu0 0.0
        %983 = vmatpush1.xpose.msra.mxu0 0.0
        %984 = vmatprep.subr.mxu0 0.0
        %985 = vmatpush1.xpose.msra.mxu0 0.0
        %986 = vmatprep.subr.mxu0 0.0
        %987 = vmatpush1.xpose.msra.mxu0 0.0
        %988 = vmatprep.mubr.f32.mxu0 0.0
        %989 = vmatmul.mubr.f32.gmra.mrb[0].mxu0 %v835
        %v990 = vpop.f32.mrb[0].mxu0
        %v991 = vadd.f32 0.0, %v990
        %v992 = vpop.f32.mrb[0].mxu0
        %993 = vmatprep.mubr.f32.mxu0 0.0
        %994 = vmatmul.mubr.f32.gmra.mrb[0].mxu0 %v836
        %v995 = vpop.f32.mrb[0].mxu0
        %v996 = vadd.f32 0.0, %v995
        %v997 = vpop.f32.mrb[0].mxu0
        %998 = vdwg.mxu0
        %v999 = vmul.f32 %v991, 0.17677669
        %v1000 = vmul.f32 %v996, 0.17677669
        %v1002 = vlaneseq
        %v1003 = vshrl.u32 %v1002, 7
        %v1004 = vsub.s32 0, %v1003
        %v1005 = vrot.slane %v843, %v1004
        %v1007 = vmul.f32 %v922, %v1005
        %v1008 = vmul.f32 %v923, %v1005
        %v1009 = vsel %vm580, %v1007, -inf
        %1010 = vmax.xlane.f32.xlu0 %v1009
        %v1011 = vpop.xlane.xlu0 %1010
        %v1012 = vsel %vm580, %v1008, -inf
        %1013 = vmax.xlane.f32.xlu0 %v1012
        %v1014 = vpop.xlane.xlu0 %1013
        %v1015 = vsub.f32 %v1007, %v1011
        %v1016 = vsub.f32 %v1008, %v1014
        %v1017 = vmul.f32 %v1015, 1.442695
        %v1018 = vpow.pop %v1017
        %v1019 = vmul.f32 %v1016, 1.442695
        %v1020 = vpow.pop %v1019
        %v1021 = vmul.f32 %v1018, %v1005
        %v1022 = vmul.f32 %v1020, %v1005
        %v1023 = vsel %vm580, %v1021, 0.0
        %1024 = vadd.xlane.f32.xlu0 %v1023
        %v1025 = vpop.xlane.xlu0 %1024
        %v1026 = vsel %vm580, %v1022, 0.0
        %1027 = vadd.xlane.f32.xlu0 %v1026
        %v1028 = vpop.xlane.xlu0 %1027
        %v1029 = vadd.f32 %v1025, 1e-13
        %v1030 = vadd.f32 %v1028, 1e-13
        %v1031 = vrcp.pop %v1029
        %v1032 = vrcp.pop %v1030
        %v1033 = vmul.f32 %v1021, %v1031
        %v1034 = vmul.f32 %v1022, %v1032
        %v1036 = vlaneseq
        %v1037 = vshrl.u32 %v1036, 7
        %v1038 = vsub.s32 0, %v1037
        %v1039 = vrot.slane %v838, %v1038
        %v1041 = vmul.f32 %v999, %v1039
        %v1042 = vmul.f32 %v1000, %v1039
        %v1043 = vsel %vm580, %v1041, -inf
        %1044 = vmax.xlane.f32.xlu0 %v1043
        %v1045 = vpop.xlane.xlu0 %1044
        %v1046 = vsel %vm580, %v1042, -inf
        %1047 = vmax.xlane.f32.xlu0 %v1046
        %v1048 = vpop.xlane.xlu0 %1047
        %v1049 = vsub.f32 %v1041, %v1045
        %v1050 = vsub.f32 %v1042, %v1048
        %v1051 = vmul.f32 %v1049, 1.442695
        %v1052 = vpow.pop %v1051
        %v1053 = vmul.f32 %v1050, 1.442695
        %v1054 = vpow.pop %v1053
        %v1055 = vmul.f32 %v1052, %v1039
        %v1056 = vmul.f32 %v1054, %v1039
        %v1057 = vsel %vm580, %v1055, 0.0
        %1058 = vadd.xlane.f32.xlu0 %v1057
        %v1059 = vpop.xlane.xlu0 %1058
        %v1060 = vsel %vm580, %v1056, 0.0
        %1061 = vadd.xlane.f32.xlu0 %v1060
        %v1062 = vpop.xlane.xlu0 %1061
        %v1063 = vadd.f32 %v1059, 1e-13
        %v1064 = vadd.f32 %v1062, 1e-13
        %v1065 = vrcp.pop %v1063
        %v1066 = vrcp.pop %v1064
        %v1067 = vmul.f32 %v1055, %v1065
        %v1068 = vmul.f32 %v1056, %v1066
        %v1070 = vsel %vm580, %v1033, 0
        %v1073 = vsel %vm580, %v1034, 0
        %1075 = vmatprep.subr.mxu0 0.0
        %1076 = vmatpush1.msra.mxu0 %v835
        %1077 = vmatprep.subr.mxu0 0.0
        %1078 = vmatpush1.msra.mxu0 %v836
        %1079 = vmatprep.subr.mxu0 0.0
        %1080 = vmatpush1.msra.mxu0 0.0
        %1081 = vmatprep.subr.mxu0 0.0
        %1082 = vmatpush1.msra.mxu0 0.0
        %1083 = vmatprep.subr.mxu0 0.0
        %1084 = vmatpush1.msra.mxu0 0.0
        %1085 = vmatprep.subr.mxu0 0.0
        %1086 = vmatpush1.msra.mxu0 0.0
        %1087 = vmatprep.subr.mxu0 0.0
        %1088 = vmatpush1.msra.mxu0 0.0
        %1089 = vmatprep.subr.mxu0 0.0
        %1090 = vmatpush1.msra.mxu0 0.0
        %1091 = vmatprep.subr.mxu0 0.0
        %1092 = vmatpush1.msra.mxu0 0.0
        %1093 = vmatprep.subr.mxu0 0.0
        %1094 = vmatpush1.msra.mxu0 0.0
        %1095 = vmatprep.subr.mxu0 0.0
        %1096 = vmatpush1.msra.mxu0 0.0
        %1097 = vmatprep.subr.mxu0 0.0
        %1098 = vmatpush1.msra.mxu0 0.0
        %1099 = vmatprep.subr.mxu0 0.0
        %1100 = vmatpush1.msra.mxu0 0.0
        %1101 = vmatprep.subr.mxu0 0.0
        %1102 = vmatpush1.msra.mxu0 0.0
        %1103 = vmatprep.subr.mxu0 0.0
        %1104 = vmatpush1.msra.mxu0 0.0
        %1105 = vmatprep.subr.mxu0 0.0
        %1106 = vmatpush1.msra.mxu0 0.0
        %1107 = vmatprep.subr.mxu0 0.0
        %1108 = vmatpush1.msra.mxu0 0.0
        %1109 = vmatprep.subr.mxu0 0.0
        %1110 = vmatpush1.msra.mxu0 0.0
        %1111 = vmatprep.subr.mxu0 0.0
        %1112 = vmatpush1.msra.mxu0 0.0
        %1113 = vmatprep.subr.mxu0 0.0
        %1114 = vmatpush1.msra.mxu0 0.0
        %1115 = vmatprep.subr.mxu0 0.0
        %1116 = vmatpush1.msra.mxu0 0.0
        %1117 = vmatprep.subr.mxu0 0.0
        %1118 = vmatpush1.msra.mxu0 0.0
        %1119 = vmatprep.subr.mxu0 0.0
        %1120 = vmatpush1.msra.mxu0 0.0
        %1121 = vmatprep.subr.mxu0 0.0
        %1122 = vmatpush1.msra.mxu0 0.0
        %1123 = vmatprep.subr.mxu0 0.0
        %1124 = vmatpush1.msra.mxu0 0.0
        %1125 = vmatprep.subr.mxu0 0.0
        %1126 = vmatpush1.msra.mxu0 0.0
        %1127 = vmatprep.subr.mxu0 0.0
        %1128 = vmatpush1.msra.mxu0 0.0
        %1129 = vmatprep.subr.mxu0 0.0
        %1130 = vmatpush1.msra.mxu0 0.0
        %1131 = vmatprep.subr.mxu0 0.0
        %1132 = vmatpush1.msra.mxu0 0.0
        %1133 = vmatprep.subr.mxu0 0.0
        %1134 = vmatpush1.msra.mxu0 0.0
        %1135 = vmatprep.subr.mxu0 0.0
        %1136 = vmatpush1.msra.mxu0 0.0
        %1137 = vmatprep.subr.mxu0 0.0
        %1138 = vmatpush1.msra.mxu0 0.0
        %1139 = vmatprep.mubr.f32.mxu0 0.0
        %1140 = vmatmul.mubr.f32.gmra.mrb[0].mxu0 %v1070
        %v1141 = vpop.f32.mrb[0].mxu0
        %v1142 = vadd.f32 0.0, %v1141
        %v1143 = vpop.f32.mrb[0].mxu0
        %1144 = vmatprep.mubr.f32.mxu0 0.0
        %1145 = vmatmul.mubr.f32.gmra.mrb[0].mxu0 %v1073
        %v1146 = vpop.f32.mrb[0].mxu0
        %v1147 = vadd.f32 0.0, %v1146
        %v1148 = vpop.f32.mrb[0].mxu0
        %1149 = vdwg.mxu0
        %1151 = vset.pattern.permute.xlu0 0
        %1152 = vperm.xlu0 %1151, %v840
        %v1153 = vpop.permute.xlu0 %1152
        %1156 = vset.pattern.permute.xlu0 0
        %1157 = vperm.xlu0 %1156, %v841
        %v1158 = vpop.permute.xlu0 %1157
        %v1160 = vmul.f32 %v1142, %v1153
        %v1161 = vmul.f32 %v1147, %v1158
        %v1163 = vsel %vm580, %v1067, 0
        %v1166 = vsel %vm580, %v1068, 0
        %1168 = vmatprep.subr.mxu0 0.0
        %1169 = vmatpush1.msra.mxu0 %v832
        %1170 = vmatprep.subr.mxu0 0.0
        %1171 = vmatpush1.msra.mxu0 %v833
        %1172 = vmatprep.subr.mxu0 0.0
        %1173 = vmatpush1.msra.mxu0 0.0
        %1174 = vmatprep.subr.mxu0 0.0
        %1175 = vmatpush1.msra.mxu0 0.0
        %1176 = vmatprep.subr.mxu0 0.0
        %1177 = vmatpush1.msra.mxu0 0.0
        %1178 = vmatprep.subr.mxu0 0.0
        %1179 = vmatpush1.msra.mxu0 0.0
        %1180 = vmatprep.subr.mxu0 0.0
        %1181 = vmatpush1.msra.mxu0 0.0
        %1182 = vmatprep.subr.mxu0 0.0
        %1183 = vmatpush1.msra.mxu0 0.0
        %1184 = vmatprep.subr.mxu0 0.0
        %1185 = vmatpush1.msra.mxu0 0.0
        %1186 = vmatprep.subr.mxu0 0.0
        %1187 = vmatpush1.msra.mxu0 0.0
        %1188 = vmatprep.subr.mxu0 0.0
        %1189 = vmatpush1.msra.mxu0 0.0
        %1190 = vmatprep.subr.mxu0 0.0
        %1191 = vmatpush1.msra.mxu0 0.0
        %1192 = vmatprep.subr.mxu0 0.0
        %1193 = vmatpush1.msra.mxu0 0.0
        %1194 = vmatprep.subr.mxu0 0.0
        %1195 = vmatpush1.msra.mxu0 0.0
        %1196 = vmatprep.subr.mxu0 0.0
        %1197 = vmatpush1.msra.mxu0 0.0
        %1198 = vmatprep.subr.mxu0 0.0
        %1199 = vmatpush1.msra.mxu0 0.0
        %1200 = vmatprep.subr.mxu0 0.0
        %1201 = vmatpush1.msra.mxu0 0.0
        %1202 = vmatprep.subr.mxu0 0.0
        %1203 = vmatpush1.msra.mxu0 0.0
        %1204 = vmatprep.subr.mxu0 0.0
        %1205 = vmatpush1.msra.mxu0 0.0
        %1206 = vmatprep.subr.mxu0 0.0
        %1207 = vmatpush1.msra.mxu0 0.0
        %1208 = vmatprep.subr.mxu0 0.0
        %1209 = vmatpush1.msra.mxu0 0.0
        %1210 = vmatprep.subr.mxu0 0.0
        %1211 = vmatpush1.msra.mxu0 0.0
        %1212 = vmatprep.subr.mxu0 0.0
        %1213 = vmatpush1.msra.mxu0 0.0
        %1214 = vmatprep.subr.mxu0 0.0
        %1215 = vmatpush1.msra.mxu0 0.0
        %1216 = vmatprep.subr.mxu0 0.0
        %1217 = vmatpush1.msra.mxu0 0.0
        %1218 = vmatprep.subr.mxu0 0.0
        %1219 = vmatpush1.msra.mxu0 0.0
        %1220 = vmatprep.subr.mxu0 0.0
        %1221 = vmatpush1.msra.mxu0 0.0
        %1222 = vmatprep.subr.mxu0 0.0
        %1223 = vmatpush1.msra.mxu0 0.0
        %1224 = vmatprep.subr.mxu0 0.0
        %1225 = vmatpush1.msra.mxu0 0.0
        %1226 = vmatprep.subr.mxu0 0.0
        %1227 = vmatpush1.msra.mxu0 0.0
        %1228 = vmatprep.subr.mxu0 0.0
        %1229 = vmatpush1.msra.mxu0 0.0
        %1230 = vmatprep.subr.mxu0 0.0
        %1231 = vmatpush1.msra.mxu0 0.0
        %1232 = vmatprep.mubr.f32.mxu0 0.0
        %1233 = vmatmul.mubr.f32.gmra.mrb[0].mxu0 %v1163
        %v1234 = vpop.f32.mrb[0].mxu0
        %v1235 = vadd.f32 0.0, %v1234
        %v1236 = vpop.f32.mrb[0].mxu0
        %1237 = vmatprep.mubr.f32.mxu0 0.0
        %1238 = vmatmul.mubr.f32.gmra.mrb[0].mxu0 %v1166
        %v1239 = vpop.f32.mrb[0].mxu0
        %v1240 = vadd.f32 0.0, %v1239
        %v1241 = vpop.f32.mrb[0].mxu0
        %1242 = vdwg.mxu0
        %1244 = vset.pattern.permute.xlu0 0
        %1245 = vperm.xlu0 %1244, %v845
        %v1246 = vpop.permute.xlu0 %1245
        %1249 = vset.pattern.permute.xlu0 0
        %1250 = vperm.xlu0 %1249, %v846
        %v1251 = vpop.permute.xlu0 %1250
        %v1253 = vmul.f32 %v1235, %v1246
        %v1254 = vmul.f32 %v1240, %v1251
        %s1255 = scalar_lea.vmem %s360, 16 [#allocation2]
        %1256 = vst [vmem:[%s1255] sm:$0xff] %v1160
        %1257 = vst [vmem:[%s1255 + $0x8] sm:$0xff] %v1161
        %s1258 = scalar_lea.vmem %s367, 16 [#allocation4]
        %1259 = vst [vmem:[%s1258] sm:$0xff] %v1253
        %1260 = vst [vmem:[%s1258 + $0x8] sm:$0xff] %v1254
        %s1261 = sand.u32 %s189, 1
        %s1262 = scalar_lea.sflag [#allocation3], %s1261
        %s1263 = sand.u32 %s189, 1
        %s1264 = smul.addr %s1263, 32
        %s1265 = scalar_lea.vmem [#allocation2], %s1264
        %s1266 = sand.u32 %s215, 1
        %s1267 = scalar_lea.sflag [#allocation5], %s1266
        %s1268 = sand.u32 %s215, 1
        %s1269 = smul.addr %s1268, 32
        %s1270 = scalar_lea.vmem [#allocation4], %s1269
        // Predicated region
        $region45: #{tpu_custom_call.1} parent=43 // pred_check
          %p1271 = pneg %p199
        $region46: #{tpu_custom_call.1} parent=43 // pred_check_branch
          %1273 = sbr.rel (%p1271) target = $region48
        $region47: #{tpu_custom_call.1} parent=43 // pred_region
          %s1274 = smul.u32 2, %s25
          %s1276 = ssub.s32 512, 512
          %1277 = vsyncadd %s1262, %s1276
          %s1278 = smul.addr %s1274, 2
          %s1279 = smul.addr %s1278, 128
          %s1280 = scalar_lea.hbm %s6, %s1279
          %s1281 = sshll.u32 %s1265, 4
          %s1282 = int_to_ptr.vmem [resolvable:$true] %s1281
          %1287 = dma.vmem_to_hbm [thread:$0]  %s1282, 512, %s1280, %s1262, 128, 128, 8
        $region48: #{tpu_custom_call.1} parent=43 // pred_fallthru
          _
        // Predicated region
        $region49: #{tpu_custom_call.1} parent=43 // pred_check
          %p1288 = pneg %p225
        $region50: #{tpu_custom_call.1} parent=43 // pred_check_branch
          %1290 = sbr.rel (%p1288) target = $region52
        $region51: #{tpu_custom_call.1} parent=43 // pred_region
          %s1291 = smul.u32 2, %s25
          %s1293 = ssub.s32 512, 512
          %1294 = vsyncadd %s1267, %s1293
          %s1295 = smul.addr %s1291, 2
          %s1296 = smul.addr %s1295, 128
          %s1297 = scalar_lea.hbm %s7, %s1296
          %s1298 = sshll.u32 %s1270, 4
          %s1299 = int_to_ptr.vmem [resolvable:$true] %s1298
          %1304 = dma.vmem_to_hbm [thread:$0]  %s1299, 512, %s1297, %s1267, 128, 128, 8
        $region52: #{tpu_custom_call.1} parent=43 // pred_fallthru
          _
      $region44: #{tpu_custom_call.1} parent=5 // pred_fallthru
        _
      %p1305 = scmp.le.s32.totalorder 2, %s20
      // Predicated region
      $region53: #{tpu_custom_call.1} parent=5 // pred_check
        %p1306 = pneg %p1305
      $region54: #{tpu_custom_call.1} parent=5 // pred_check_branch
        %1308 = sbr.rel (%p1306) target = $region56
      $region55: #{tpu_custom_call.1} parent=5 // pred_region
        %s1309 = ssub.s32 %s20, 2
        // Predicated region
        $region57: #{tpu_custom_call.1} parent=55 // pred_check
          %p1310 = pneg %p205
        $region58: #{tpu_custom_call.1} parent=55 // pred_check_branch
          %1312 = sbr.rel (%p1310) target = $region60
        $region59: #{tpu_custom_call.1} parent=55 // pred_region
          %s1313 = sand.u32 %s190, 1
          %s1314 = scalar_lea.sflag [#allocation3], %s1313
          %s1315 = sand.u32 %s190, 1
          %s1316 = smul.addr %s1315, 32
          %s1317 = scalar_lea.vmem [#allocation2], %s1316
          %1318 = dma.done %s1314, 512
        $region60: #{tpu_custom_call.1} parent=55 // pred_fallthru
          _
        // Predicated region
        $region61: #{tpu_custom_call.1} parent=55 // pred_check
          %p1319 = pneg %p231
        $region62: #{tpu_custom_call.1} parent=55 // pred_check_branch
          %1321 = sbr.rel (%p1319) target = $region64
        $region63: #{tpu_custom_call.1} parent=55 // pred_region
          %s1322 = sand.u32 %s216, 1
          %s1323 = scalar_lea.sflag [#allocation5], %s1322
          %s1324 = sand.u32 %s216, 1
          %s1325 = smul.addr %s1324, 32
          %s1326 = scalar_lea.vmem [#allocation4], %s1325
          %1327 = dma.done %s1323, 512
        $region64: #{tpu_custom_call.1} parent=55 // pred_fallthru
          _
      $region56: #{tpu_custom_call.1} parent=5 // pred_fallthru
        _
    $region6: #{tpu_custom_call.1} parent=1 // loop_footer
      %s24 = sadd.s32 1, %s20
    $region7: #{tpu_custom_call.1} parent=1 // loop_footer_branch
      %19 = sbr.rel target = $region3
    $region8: #{tpu_custom_call.1} parent=1 // loop_exit
      _
    %1328 = vsyncpa [#allocation3], 1
    %s1329 = scalar_lea.sflag [#allocation3], 1
    %1330 = vsyncpa %s1329, 1
    %1331 = vsyncpa [#allocation5], 1
    %s1332 = scalar_lea.sflag [#allocation5], 1
    %1333 = vsyncpa %s1332, 1

</llo_original>
